<compile_context>
chip_gen: v7x
topology: tpu7x:2x2x1
jax: 0.10.0
libtpu: 0.0.40
codegen_flags: <defaults>
</compile_context>

<pallas_src>
import math
import functools

import jax
import jax.numpy as jnp
from jax import lax
from jax.experimental import pallas as pl
from jax.experimental.pallas import tpu as pltpu

# ----------------------------- config ---------------------------------------
N_EMBD = 32
N_HEAD = 4
HEAD_DIM = N_EMBD // N_HEAD
BLOCK_SIZE = 8          # max sequence length (causal mask buffer size)
LN_EPS = 1e-5
NEG_INF = -1e30         # large finite negative; diagonal is never masked


# ----------------------------- kernel ---------------------------------------
def _block_kernel(x_ref, w_in_ref, w2_ref, vec_ref, out_ref, *,
                  n_head, head_dim, seq_len):
    N, C = x_ref.shape            # N = B*T (flattened tokens)
    T = seq_len
    B = N // T
    C3 = 3 * C

    x = x_ref[...].astype(jnp.float32)

    # Packed parameter slabs: one DMA each; static slices below are cheap views.
    w_in = w_in_ref[...]          # (C, 8C) = [Wqkv(3C) | Wproj(C) | W1(4C)]
    vec = vec_ref[...]            # (4, 4C): [b_qkv | b_proj | b_fc1 | b_fc2] rows
    w_qkv = w_in[:, 0:C3]         # LN1 affine + 1/sqrt(head_dim) already folded in
    w_proj = w_in[:, C3:C3 + C]
    w_fc1 = w_in[:, C3 + C:]      # LN2 affine already folded in

    b_qkv = vec[0:1, :C3]
    b_proj = vec[1:2, :C]
    b_fc1 = vec[2:3, :]
    b_fc2 = vec[3:4, :C]

    def layernorm(v):
        # Affine (gamma/beta) folded into the following matmul host-side.
        mu = jnp.mean(v, axis=-1, keepdims=True)
        d = v - mu
        var = jnp.mean(d * d, axis=-1, keepdims=True)
        return d * lax.rsqrt(var + LN_EPS)

    # ---- LN1 + causal self-attention ----------------------------------------
    h = layernorm(x)

    # Fused QKV projection: one MXU push with N=3C instead of three with N=C.
    qkv = jnp.dot(h, w_qkv, preferred_element_type=jnp.float32) + b_qkv   # (N, 3C)
    q = qkv[:, 0:C].reshape(B, T, C)          # attention scale folded into weights
    k = qkv[:, C:2 * C].reshape(B, T, C)
    v = qkv[:, 2 * C:C3].reshape(B, T, C)

    # Additive causal bias, built once (B, T, T): no per-head select/broadcast.
    row = lax.broadcasted_iota(jnp.int32, (B, T, T), 1)
    col = lax.broadcasted_iota(jnp.int32, (B, T, T), 2)
    bias = jnp.where(row >= col, 0.0, NEG_INF)                            # (B, T, T)

    head_outs = []
    for hd in range(n_head):
        sl = slice(hd * head_dim, (hd + 1) * head_dim)
        qh, kh, vh = q[..., sl], k[..., sl], v[..., sl]            # (B, T, D)
        att = jnp.einsum('btd,bsd->bts', qh, kh,
                         preferred_element_type=jnp.float32)       # (B, T, T)
        att = att + bias
        m = jnp.max(att, axis=-1, keepdims=True)
        e = jnp.exp(att - m)
        p = e * pl.reciprocal(jnp.sum(e, axis=-1, keepdims=True), approx=True)
        head_outs.append(
            jnp.einsum('bts,bsd->btd', p, vh,
                       preferred_element_type=jnp.float32))        # (B, T, D)
    y = jnp.concatenate(head_outs, axis=-1).reshape(N, C)

    y = jnp.dot(y, w_proj, preferred_element_type=jnp.float32) + b_proj
    x1 = x + y                                                     # residual 1

    # ---- LN2 + feed-forward --------------------------------------------------
    h2 = layernorm(x1)
    f = jnp.dot(h2, w_fc1, preferred_element_type=jnp.float32) + b_fc1
    # tanh-approx GELU: transcendental goes to the EUP slot (VALU is binding).
    c0 = math.sqrt(2.0 / math.pi)
    f = 0.5 * f * (1.0 + jnp.tanh(c0 * (f + 0.044715 * f * f * f)))
    f = jnp.dot(f, w2_ref[...], preferred_element_type=jnp.float32) + b_fc2

    out_ref[...] = (x1 + f).astype(out_ref.dtype)                  # residual 2


# --------------------- host-side parameter packing ---------------------------
def pack_params(p):
    """Fold LN affines + attention scale into adjacent matmuls; pack into 3 arrays."""
    C = N_EMBD
    scale = 1.0 / math.sqrt(HEAD_DIM)

    # Fold LN1 (gamma, beta) into the Q/K/V projections:
    #   (n * g + beta) @ W + b = n @ (diag(g) @ W) + (beta @ W + b)
    g1 = p["ln1_w"].reshape(C, 1)
    beta1 = p["ln1_b"].reshape(1, C)
    wq = g1 * p["wq"]
    wk = g1 * p["wk"]
    wv = g1 * p["wv"]
    bq = p["bq"].reshape(1, C) + beta1 @ p["wq"]
    bk = p["bk"].reshape(1, C) + beta1 @ p["wk"]
    bv = p["bv"].reshape(1, C) + beta1 @ p["wv"]
    # Fold 1/sqrt(head_dim) into the Q columns.
    wq = wq * scale
    bq = bq * scale

    # Fold LN2 (gamma, beta) into the first FFN projection.
    g2 = p["ln2_w"].reshape(C, 1)
    beta2 = p["ln2_b"].reshape(1, C)
    w1 = g2 * p["w1"]
    b1 = p["b1"].reshape(1, -1) + beta2 @ p["w1"]

    w_in = jnp.concatenate([wq, wk, wv, p["wp"], w1], axis=1)       # (C, 8C)

    def row(v):
        v = jnp.reshape(v, (1, -1)).astype(jnp.float32)
        return jnp.pad(v, ((0, 0), (0, 4 * C - v.shape[1])))

    b_qkv = jnp.concatenate([bq, bk, bv], axis=1)                   # (1, 3C)
    vec = jnp.concatenate(
        [row(b_qkv), row(p["bp"]), row(b1), row(p["b2"])], axis=0)  # (4, 4C)
    return {"w_in": w_in.astype(jnp.float32),
            "w_out": p["w2"].astype(jnp.float32),
            "vec": vec}


# ----------------------------- wrapper ---------------------------------------
def block_forward(x, packed):
    B, T, C = x.shape
    assert C == N_EMBD and T <= BLOCK_SIZE
    N = B * T
    x2 = x.reshape(N, C)                      # free metadata reshape outside kernel

    w_in, w_out, vec = packed["w_in"], packed["w_out"], packed["vec"]
    kernel = functools.partial(_block_kernel, n_head=N_HEAD,
                               head_dim=HEAD_DIM, seq_len=T)

    # Single grid step: at N=16 the kernel is launch/DMA-latency bound.  If N
    # grows to hundreds+ of tokens, split the token dim into a "parallel" grid
    # axis (blocks of 128-256 rows) so v7x's second TensorCore is used.
    out = pl.pallas_call(
        kernel,
        out_shape=jax.ShapeDtypeStruct((N, C), x.dtype),
        grid=(1,),
        in_specs=[
            pl.BlockSpec((N, C), lambda i: (0, 0)),
            pl.BlockSpec(w_in.shape, lambda i: (0, 0)),
            pl.BlockSpec(w_out.shape, lambda i: (0, 0)),
            pl.BlockSpec(vec.shape, lambda i: (0, 0)),
        ],
        out_specs=pl.BlockSpec((N, C), lambda i: (0, 0)),
        compiler_params=pltpu.CompilerParams(
            dimension_semantics=("arbitrary",)),
    )(x2, w_in, w_out, vec)
    return out.reshape(B, T, C)


# --------------------- deterministic parameter init --------------------------
def init_params(key):
    ks = jax.random.split(key, 8)
    s = 0.02
    C, H = N_EMBD, 4 * N_EMBD
    return {
        "ln1_w": jnp.ones((1, C), jnp.float32),
        "ln1_b": jnp.zeros((1, C), jnp.float32),
        "wq": s * jax.random.normal(ks[0], (C, C), jnp.float32),
        "bq": jnp.zeros((1, C), jnp.float32),
        "wk": s * jax.random.normal(ks[1], (C, C), jnp.float32),
        "bk": jnp.zeros((1, C), jnp.float32),
        "wv": s * jax.random.normal(ks[2], (C, C), jnp.float32),
        "bv": jnp.zeros((1, C), jnp.float32),
        "wp": s * jax.random.normal(ks[3], (C, C), jnp.float32),
        "bp": jnp.zeros((1, C), jnp.float32),
        "ln2_w": jnp.ones((1, C), jnp.float32),
        "ln2_b": jnp.zeros((1, C), jnp.float32),
        "w1": s * jax.random.normal(ks[4], (C, H), jnp.float32),
        "b1": jnp.zeros((1, H), jnp.float32),
        "w2": s * jax.random.normal(ks[5], (H, C), jnp.float32),
        "b2": jnp.zeros((1, C), jnp.float32),
    }


# --------------------------- pure-JAX reference ------------------------------
def ref_block(x, p):
    """Matches the PyTorch module exactly (full LN affine, exact-erf GELU)."""
    def ln(v, w, b):
        mu = v.mean(-1, keepdims=True)
        var = ((v - mu) ** 2).mean(-1, keepdims=True)
        return (v - mu) / jnp.sqrt(var + LN_EPS) * w + b

    B, T, C = x.shape
    h = ln(x, p["ln1_w"][0], p["ln1_b"][0])
    q = (h @ p["wq"] + p["bq"]).reshape(B, T, N_HEAD, HEAD_DIM).transpose(0, 2, 1, 3)
    k = (h @ p["wk"] + p["bk"]).reshape(B, T, N_HEAD, HEAD_DIM).transpose(0, 2, 1, 3)
    v = (h @ p["wv"] + p["bv"]).reshape(B, T, N_HEAD, HEAD_DIM).transpose(0, 2, 1, 3)
    att = (q @ k.transpose(0, 1, 3, 2)) / math.sqrt(HEAD_DIM)
    mask = jnp.tril(jnp.ones((T, T), bool))
    att = jnp.where(mask[None, None], att, -jnp.inf)
    att = jax.nn.softmax(att, axis=-1)
    y = (att @ v).transpose(0, 2, 1, 3).reshape(B, T, C)
    y = y @ p["wp"] + p["bp"]
    x1 = x + y
    h2 = ln(x1, p["ln2_w"][0], p["ln2_b"][0])
    f = h2 @ p["w1"] + p["b1"]
    f = 0.5 * f * (1.0 + lax.erf(f / math.sqrt(2.0)))      # exact GELU (PyTorch default)
    f = f @ p["w2"] + p["b2"]
    return x1 + f


# ------------------------------- main ----------------------------------------
if __name__ == "__main__":
    key = jax.random.PRNGKey(0)
    kp, kx = jax.random.split(key)
    params = init_params(kp)
    packed = pack_params(params)

    B, T = 2, 8
    x = jax.random.normal(kx, (B, T, N_EMBD), jnp.float32)

    out = block_forward(x, packed)
    out = jax.block_until_ready(out)

    ref = ref_block(x, params)
    assert out.shape == (B, T, N_EMBD)
    # Tolerance 1e-3 covers: pl.reciprocal(approx=True) in the softmax
    # denominator and the tanh-approx GELU vs. the exact-erf reference
    # (both << 1e-3 at these activation magnitudes).
    assert jnp.allclose(out, ref, rtol=1e-3, atol=1e-3), float(
        jnp.max(jnp.abs(out - ref)))

    print("KERNEL_OK")
</pallas_src>

<mosaic_0001>
module attributes {stable_mosaic.version = 11 : i64} {
  func.func @_block_kernel(%arg0: i32, %arg1: memref<16x32xf32, #tpu.memory_space<vmem>>, %arg2: memref<32x256xf32, #tpu.memory_space<vmem>>, %arg3: memref<128x32xf32, #tpu.memory_space<vmem>>, %arg4: memref<4x128xf32, #tpu.memory_space<vmem>>, %arg5: memref<16x32xf32, #tpu.memory_space<vmem>>) attributes {dimension_semantics = [#tpu.dimension_semantics<arbitrary>], iteration_bounds = array<i64: 1>, scalar_prefetch = 0 : i64, scratch_operands = 0 : i64, tpu.core_type = #tpu.core_type<tc>, window_params = [{pipeline_mode = #tpu.pipeline_mode<synchronous>, transform_indices = @transform_0, window_bounds = array<i64: 16, 32>}, {pipeline_mode = #tpu.pipeline_mode<synchronous>, transform_indices = @transform_1, window_bounds = array<i64: 32, 256>}, {pipeline_mode = #tpu.pipeline_mode<synchronous>, transform_indices = @transform_2, window_bounds = array<i64: 128, 32>}, {pipeline_mode = #tpu.pipeline_mode<synchronous>, transform_indices = @transform_3, window_bounds = array<i64: 4, 128>}, {pipeline_mode = #tpu.pipeline_mode<synchronous>, transform_indices = @transform_4, window_bounds = array<i64: 16, 32>}]} {
    %c0 = arith.constant 0 : index
    %c0_0 = arith.constant 0 : index
    %0 = vector.load %arg1[%c0, %c0_0] : memref<16x32xf32, #tpu.memory_space<vmem>>, vector<16x32xf32>
    %c0_1 = arith.constant 0 : index
    %c0_2 = arith.constant 0 : index
    %1 = vector.load %arg2[%c0_1, %c0_2] : memref<32x256xf32, #tpu.memory_space<vmem>>, vector<32x256xf32>
    %c0_3 = arith.constant 0 : index
    %c0_4 = arith.constant 0 : index
    %2 = vector.load %arg4[%c0_3, %c0_4] : memref<4x128xf32, #tpu.memory_space<vmem>>, vector<4x128xf32>
    %3 = vector.extract_strided_slice %1 {offsets = [0, 0], sizes = [32, 96], strides = [1, 1]} : vector<32x256xf32> to vector<32x96xf32>
    %4 = vector.extract_strided_slice %1 {offsets = [0, 96], sizes = [32, 32], strides = [1, 1]} : vector<32x256xf32> to vector<32x32xf32>
    %5 = vector.extract_strided_slice %1 {offsets = [0, 128], sizes = [32, 128], strides = [1, 1]} : vector<32x256xf32> to vector<32x128xf32>
    %6 = vector.extract_strided_slice %2 {offsets = [0, 0], sizes = [1, 96], strides = [1, 1]} : vector<4x128xf32> to vector<1x96xf32>
    %7 = vector.extract_strided_slice %2 {offsets = [1, 0], sizes = [1, 32], strides = [1, 1]} : vector<4x128xf32> to vector<1x32xf32>
    %8 = vector.extract_strided_slice %2 {offsets = [2, 0], sizes = [1, 128], strides = [1, 1]} : vector<4x128xf32> to vector<1x128xf32>
    %9 = vector.extract_strided_slice %2 {offsets = [3, 0], sizes = [1, 32], strides = [1, 1]} : vector<4x128xf32> to vector<1x32xf32>
    %cst = arith.constant dense<0.000000e+00> : vector<16xf32>
    %10 = vector.multi_reduction <add>, %0, %cst [1] : vector<16x32xf32> to vector<16xf32>
    %11 = vector.shape_cast %10 : vector<16xf32> to vector<16x1xf32>
    %cst_5 = arith.constant 3.200000e+01 : f32
    %12 = vector.broadcast %cst_5 : f32 to vector<16x1xf32>
    %13 = arith.divf %11, %12 : vector<16x1xf32>
    %14 = vector.broadcast %13 : vector<16x1xf32> to vector<16x32xf32>
    %15 = arith.subf %0, %14 : vector<16x32xf32>
    %16 = arith.mulf %15, %15 : vector<16x32xf32>
    %cst_6 = arith.constant dense<0.000000e+00> : vector<16xf32>
    %17 = vector.multi_reduction <add>, %16, %cst_6 [1] : vector<16x32xf32> to vector<16xf32>
    %18 = vector.shape_cast %17 : vector<16xf32> to vector<16x1xf32>
    %cst_7 = arith.constant 3.200000e+01 : f32
    %19 = vector.broadcast %cst_7 : f32 to vector<16x1xf32>
    %20 = arith.divf %18, %19 : vector<16x1xf32>
    %cst_8 = arith.constant 9.99999974E-6 : f32
    %21 = vector.broadcast %cst_8 : f32 to vector<16x1xf32>
    %22 = arith.addf %20, %21 : vector<16x1xf32>
    %23 = math.rsqrt %22 : vector<16x1xf32>
    %24 = vector.broadcast %23 : vector<16x1xf32> to vector<16x32xf32>
    %25 = arith.mulf %15, %24 : vector<16x32xf32>
    %cst_9 = arith.constant dense<0.000000e+00> : vector<16x96xf32>
    %26 = tpu.matmul %25, %3, %cst_9 {dimension_numbers = #tpu.dot_dimension_numbers<[1], [0], [0], [1], [0, 0, 1, 1], [], []>} : vector<16x32xf32>, vector<32x96xf32>, vector<16x96xf32> -> vector<16x96xf32>
    %27 = vector.broadcast %6 : vector<1x96xf32> to vector<16x96xf32>
    %28 = arith.addf %26, %27 : vector<16x96xf32>
    %29 = vector.extract_strided_slice %28 {offsets = [0, 0], sizes = [16, 32], strides = [1, 1]} : vector<16x96xf32> to vector<16x32xf32>
    %30 = vector.shape_cast %29 : vector<16x32xf32> to vector<2x8x32xf32>
    %31 = vector.extract_strided_slice %28 {offsets = [0, 32], sizes = [16, 32], strides = [1, 1]} : vector<16x96xf32> to vector<16x32xf32>
    %32 = vector.shape_cast %31 : vector<16x32xf32> to vector<2x8x32xf32>
    %33 = vector.extract_strided_slice %28 {offsets = [0, 64], sizes = [16, 32], strides = [1, 1]} : vector<16x96xf32> to vector<16x32xf32>
    %34 = vector.shape_cast %33 : vector<16x32xf32> to vector<2x8x32xf32>
    %35 = tpu.iota {dimensions = array<i32: 1>} : vector<2x8x8xi32>
    %36 = tpu.iota {dimensions = array<i32: 2>} : vector<2x8x8xi32>
    %37 = arith.cmpi sge, %35, %36 : vector<2x8x8xi32>
    %cst_10 = arith.constant 0.000000e+00 : f32
    %cst_11 = arith.constant -1.000000e+30 : f32
    %38 = vector.broadcast %cst_10 : f32 to vector<2x8x8xf32>
    %39 = vector.broadcast %cst_11 : f32 to vector<2x8x8xf32>
    %40 = arith.select %37, %38, %39 : vector<2x8x8xi1>, vector<2x8x8xf32>
    %41 = vector.extract_strided_slice %30 {offsets = [0, 0, 0], sizes = [2, 8, 8], strides = [1, 1, 1]} : vector<2x8x32xf32> to vector<2x8x8xf32>
    %42 = vector.extract_strided_slice %32 {offsets = [0, 0, 0], sizes = [2, 8, 8], strides = [1, 1, 1]} : vector<2x8x32xf32> to vector<2x8x8xf32>
    %43 = vector.extract_strided_slice %34 {offsets = [0, 0, 0], sizes = [2, 8, 8], strides = [1, 1, 1]} : vector<2x8x32xf32> to vector<2x8x8xf32>
    "tpu.trace_start"() <{level = 10 : i32, message = "btd,bsd->bts"}> : () -> ()
    %cst_12 = arith.constant dense<0.000000e+00> : vector<2x8x8xf32>
    %44 = tpu.matmul %41, %42, %cst_12 {dimension_numbers = #tpu.dot_dimension_numbers<[2], [2], [1], [1], [0, 0, 0, 1, 1, 1], [0], [0]>} : vector<2x8x8xf32>, vector<2x8x8xf32>, vector<2x8x8xf32> -> vector<2x8x8xf32>
    "tpu.trace_stop"() : () -> ()
    %45 = arith.addf %44, %40 : vector<2x8x8xf32>
    %cst_13 = arith.constant dense<0xFF800000> : vector<2x8xf32>
    %46 = vector.multi_reduction <maximumf>, %45, %cst_13 [2] : vector<2x8x8xf32> to vector<2x8xf32>
    %47 = vector.shape_cast %46 : vector<2x8xf32> to vector<2x8x1xf32>
    %48 = vector.broadcast %47 : vector<2x8x1xf32> to vector<2x8x8xf32>
    %49 = arith.subf %45, %48 : vector<2x8x8xf32>
    %50 = math.exp %49 : vector<2x8x8xf32>
    %cst_14 = arith.constant dense<0.000000e+00> : vector<2x8xf32>
    %51 = vector.multi_reduction <add>, %50, %cst_14 [2] : vector<2x8x8xf32> to vector<2x8xf32>
    %52 = vector.shape_cast %51 : vector<2x8xf32> to vector<2x8x1xf32>
    %53 = tpu.reciprocal %52 {approx = true} : vector<2x8x1xf32> -> vector<2x8x1xf32>
    %54 = vector.broadcast %53 : vector<2x8x1xf32> to vector<2x8x8xf32>
    %55 = arith.mulf %50, %54 : vector<2x8x8xf32>
    "tpu.trace_start"() <{level = 10 : i32, message = "bts,bsd->btd"}> : () -> ()
    %cst_15 = arith.constant dense<0.000000e+00> : vector<2x8x8xf32>
    %56 = tpu.matmul %55, %43, %cst_15 {dimension_numbers = #tpu.dot_dimension_numbers<[2], [1], [1], [2], [0, 0, 0, 1, 1, 2], [0], [0]>} : vector<2x8x8xf32>, vector<2x8x8xf32>, vector<2x8x8xf32> -> vector<2x8x8xf32>
    "tpu.trace_stop"() : () -> ()
    %57 = vector.extract_strided_slice %30 {offsets = [0, 0, 8], sizes = [2, 8, 8], strides = [1, 1, 1]} : vector<2x8x32xf32> to vector<2x8x8xf32>
    %58 = vector.extract_strided_slice %32 {offsets = [0, 0, 8], sizes = [2, 8, 8], strides = [1, 1, 1]} : vector<2x8x32xf32> to vector<2x8x8xf32>
    %59 = vector.extract_strided_slice %34 {offsets = [0, 0, 8], sizes = [2, 8, 8], strides = [1, 1, 1]} : vector<2x8x32xf32> to vector<2x8x8xf32>
    "tpu.trace_start"() <{level = 10 : i32, message = "btd,bsd->bts"}> : () -> ()
    %cst_16 = arith.constant dense<0.000000e+00> : vector<2x8x8xf32>
    %60 = tpu.matmul %57, %58, %cst_16 {dimension_numbers = #tpu.dot_dimension_numbers<[2], [2], [1], [1], [0, 0, 0, 1, 1, 1], [0], [0]>} : vector<2x8x8xf32>, vector<2x8x8xf32>, vector<2x8x8xf32> -> vector<2x8x8xf32>
    "tpu.trace_stop"() : () -> ()
    %61 = arith.addf %60, %40 : vector<2x8x8xf32>
    %cst_17 = arith.constant dense<0xFF800000> : vector<2x8xf32>
    %62 = vector.multi_reduction <maximumf>, %61, %cst_17 [2] : vector<2x8x8xf32> to vector<2x8xf32>
    %63 = vector.shape_cast %62 : vector<2x8xf32> to vector<2x8x1xf32>
    %64 = vector.broadcast %63 : vector<2x8x1xf32> to vector<2x8x8xf32>
    %65 = arith.subf %61, %64 : vector<2x8x8xf32>
    %66 = math.exp %65 : vector<2x8x8xf32>
    %cst_18 = arith.constant dense<0.000000e+00> : vector<2x8xf32>
    %67 = vector.multi_reduction <add>, %66, %cst_18 [2] : vector<2x8x8xf32> to vector<2x8xf32>
    %68 = vector.shape_cast %67 : vector<2x8xf32> to vector<2x8x1xf32>
    %69 = tpu.reciprocal %68 {approx = true} : vector<2x8x1xf32> -> vector<2x8x1xf32>
    %70 = vector.broadcast %69 : vector<2x8x1xf32> to vector<2x8x8xf32>
    %71 = arith.mulf %66, %70 : vector<2x8x8xf32>
    "tpu.trace_start"() <{level = 10 : i32, message = "bts,bsd->btd"}> : () -> ()
    %cst_19 = arith.constant dense<0.000000e+00> : vector<2x8x8xf32>
    %72 = tpu.matmul %71, %59, %cst_19 {dimension_numbers = #tpu.dot_dimension_numbers<[2], [1], [1], [2], [0, 0, 0, 1, 1, 2], [0], [0]>} : vector<2x8x8xf32>, vector<2x8x8xf32>, vector<2x8x8xf32> -> vector<2x8x8xf32>
    "tpu.trace_stop"() : () -> ()
    %73 = vector.extract_strided_slice %30 {offsets = [0, 0, 16], sizes = [2, 8, 8], strides = [1, 1, 1]} : vector<2x8x32xf32> to vector<2x8x8xf32>
    %74 = vector.extract_strided_slice %32 {offsets = [0, 0, 16], sizes = [2, 8, 8], strides = [1, 1, 1]} : vector<2x8x32xf32> to vector<2x8x8xf32>
    %75 = vector.extract_strided_slice %34 {offsets = [0, 0, 16], sizes = [2, 8, 8], strides = [1, 1, 1]} : vector<2x8x32xf32> to vector<2x8x8xf32>
    "tpu.trace_start"() <{level = 10 : i32, message = "btd,bsd->bts"}> : () -> ()
    %cst_20 = arith.constant dense<0.000000e+00> : vector<2x8x8xf32>
    %76 = tpu.matmul %73, %74, %cst_20 {dimension_numbers = #tpu.dot_dimension_numbers<[2], [2], [1], [1], [0, 0, 0, 1, 1, 1], [0], [0]>} : vector<2x8x8xf32>, vector<2x8x8xf32>, vector<2x8x8xf32> -> vector<2x8x8xf32>
    "tpu.trace_stop"() : () -> ()
    %77 = arith.addf %76, %40 : vector<2x8x8xf32>
    %cst_21 = arith.constant dense<0xFF800000> : vector<2x8xf32>
    %78 = vector.multi_reduction <maximumf>, %77, %cst_21 [2] : vector<2x8x8xf32> to vector<2x8xf32>
    %79 = vector.shape_cast %78 : vector<2x8xf32> to vector<2x8x1xf32>
    %80 = vector.broadcast %79 : vector<2x8x1xf32> to vector<2x8x8xf32>
    %81 = arith.subf %77, %80 : vector<2x8x8xf32>
    %82 = math.exp %81 : vector<2x8x8xf32>
    %cst_22 = arith.constant dense<0.000000e+00> : vector<2x8xf32>
    %83 = vector.multi_reduction <add>, %82, %cst_22 [2] : vector<2x8x8xf32> to vector<2x8xf32>
    %84 = vector.shape_cast %83 : vector<2x8xf32> to vector<2x8x1xf32>
    %85 = tpu.reciprocal %84 {approx = true} : vector<2x8x1xf32> -> vector<2x8x1xf32>
    %86 = vector.broadcast %85 : vector<2x8x1xf32> to vector<2x8x8xf32>
    %87 = arith.mulf %82, %86 : vector<2x8x8xf32>
    "tpu.trace_start"() <{level = 10 : i32, message = "bts,bsd->btd"}> : () -> ()
    %cst_23 = arith.constant dense<0.000000e+00> : vector<2x8x8xf32>
    %88 = tpu.matmul %87, %75, %cst_23 {dimension_numbers = #tpu.dot_dimension_numbers<[2], [1], [1], [2], [0, 0, 0, 1, 1, 2], [0], [0]>} : vector<2x8x8xf32>, vector<2x8x8xf32>, vector<2x8x8xf32> -> vector<2x8x8xf32>
    "tpu.trace_stop"() : () -> ()
    %89 = vector.extract_strided_slice %30 {offsets = [0, 0, 24], sizes = [2, 8, 8], strides = [1, 1, 1]} : vector<2x8x32xf32> to vector<2x8x8xf32>
    %90 = vector.extract_strided_slice %32 {offsets = [0, 0, 24], sizes = [2, 8, 8], strides = [1, 1, 1]} : vector<2x8x32xf32> to vector<2x8x8xf32>
    %91 = vector.extract_strided_slice %34 {offsets = [0, 0, 24], sizes = [2, 8, 8], strides = [1, 1, 1]} : vector<2x8x32xf32> to vector<2x8x8xf32>
    "tpu.trace_start"() <{level = 10 : i32, message = "btd,bsd->bts"}> : () -> ()
    %cst_24 = arith.constant dense<0.000000e+00> : vector<2x8x8xf32>
    %92 = tpu.matmul %89, %90, %cst_24 {dimension_numbers = #tpu.dot_dimension_numbers<[2], [2], [1], [1], [0, 0, 0, 1, 1, 1], [0], [0]>} : vector<2x8x8xf32>, vector<2x8x8xf32>, vector<2x8x8xf32> -> vector<2x8x8xf32>
    "tpu.trace_stop"() : () -> ()
    %93 = arith.addf %92, %40 : vector<2x8x8xf32>
    %cst_25 = arith.constant dense<0xFF800000> : vector<2x8xf32>
    %94 = vector.multi_reduction <maximumf>, %93, %cst_25 [2] : vector<2x8x8xf32> to vector<2x8xf32>
    %95 = vector.shape_cast %94 : vector<2x8xf32> to vector<2x8x1xf32>
    %96 = vector.broadcast %95 : vector<2x8x1xf32> to vector<2x8x8xf32>
    %97 = arith.subf %93, %96 : vector<2x8x8xf32>
    %98 = math.exp %97 : vector<2x8x8xf32>
    %cst_26 = arith.constant dense<0.000000e+00> : vector<2x8xf32>
    %99 = vector.multi_reduction <add>, %98, %cst_26 [2] : vector<2x8x8xf32> to vector<2x8xf32>
    %100 = vector.shape_cast %99 : vector<2x8xf32> to vector<2x8x1xf32>
    %101 = tpu.reciprocal %100 {approx = true} : vector<2x8x1xf32> -> vector<2x8x1xf32>
    %102 = vector.broadcast %101 : vector<2x8x1xf32> to vector<2x8x8xf32>
    %103 = arith.mulf %98, %102 : vector<2x8x8xf32>
    "tpu.trace_start"() <{level = 10 : i32, message = "bts,bsd->btd"}> : () -> ()
    %cst_27 = arith.constant dense<0.000000e+00> : vector<2x8x8xf32>
    %104 = tpu.matmul %103, %91, %cst_27 {dimension_numbers = #tpu.dot_dimension_numbers<[2], [1], [1], [2], [0, 0, 0, 1, 1, 2], [0], [0]>} : vector<2x8x8xf32>, vector<2x8x8xf32>, vector<2x8x8xf32> -> vector<2x8x8xf32>
    "tpu.trace_stop"() : () -> ()
    %105 = tpu.concatenate %56, %72, %88, %104 in 2 : vector<2x8x8xf32>, vector<2x8x8xf32>, vector<2x8x8xf32>, vector<2x8x8xf32> -> vector<2x8x32xf32>
    %106 = vector.shape_cast %105 : vector<2x8x32xf32> to vector<16x32xf32>
    %cst_28 = arith.constant dense<0.000000e+00> : vector<16x32xf32>
    %107 = tpu.matmul %106, %4, %cst_28 {dimension_numbers = #tpu.dot_dimension_numbers<[1], [0], [0], [1], [0, 0, 1, 1], [], []>} : vector<16x32xf32>, vector<32x32xf32>, vector<16x32xf32> -> vector<16x32xf32>
    %108 = vector.broadcast %7 : vector<1x32xf32> to vector<16x32xf32>
    %109 = arith.addf %107, %108 : vector<16x32xf32>
    %110 = arith.addf %0, %109 : vector<16x32xf32>
    %cst_29 = arith.constant dense<0.000000e+00> : vector<16xf32>
    %111 = vector.multi_reduction <add>, %110, %cst_29 [1] : vector<16x32xf32> to vector<16xf32>
    %112 = vector.shape_cast %111 : vector<16xf32> to vector<16x1xf32>
    %cst_30 = arith.constant 3.200000e+01 : f32
    %113 = vector.broadcast %cst_30 : f32 to vector<16x1xf32>
    %114 = arith.divf %112, %113 : vector<16x1xf32>
    %115 = vector.broadcast %114 : vector<16x1xf32> to vector<16x32xf32>
    %116 = arith.subf %110, %115 : vector<16x32xf32>
    %117 = arith.mulf %116, %116 : vector<16x32xf32>
    %cst_31 = arith.constant dense<0.000000e+00> : vector<16xf32>
    %118 = vector.multi_reduction <add>, %117, %cst_31 [1] : vector<16x32xf32> to vector<16xf32>
    %119 = vector.shape_cast %118 : vector<16xf32> to vector<16x1xf32>
    %cst_32 = arith.constant 3.200000e+01 : f32
    %120 = vector.broadcast %cst_32 : f32 to vector<16x1xf32>
    %121 = arith.divf %119, %120 : vector<16x1xf32>
    %cst_33 = arith.constant 9.99999974E-6 : f32
    %122 = vector.broadcast %cst_33 : f32 to vector<16x1xf32>
    %123 = arith.addf %121, %122 : vector<16x1xf32>
    %124 = math.rsqrt %123 : vector<16x1xf32>
    %125 = vector.broadcast %124 : vector<16x1xf32> to vector<16x32xf32>
    %126 = arith.mulf %116, %125 : vector<16x32xf32>
    %cst_34 = arith.constant dense<0.000000e+00> : vector<16x128xf32>
    %127 = tpu.matmul %126, %5, %cst_34 {dimension_numbers = #tpu.dot_dimension_numbers<[1], [0], [0], [1], [0, 0, 1, 1], [], []>} : vector<16x32xf32>, vector<32x128xf32>, vector<16x128xf32> -> vector<16x128xf32>
    %128 = vector.broadcast %8 : vector<1x128xf32> to vector<16x128xf32>
    %129 = arith.addf %127, %128 : vector<16x128xf32>
    %cst_35 = arith.constant 5.000000e-01 : f32
    %130 = vector.broadcast %cst_35 : f32 to vector<16x128xf32>
    %131 = arith.mulf %130, %129 : vector<16x128xf32>
    %cst_36 = arith.constant 4.471500e-02 : f32
    %132 = vector.broadcast %cst_36 : f32 to vector<16x128xf32>
    %133 = arith.mulf %132, %129 : vector<16x128xf32>
    %134 = arith.mulf %133, %129 : vector<16x128xf32>
    %135 = arith.mulf %134, %129 : vector<16x128xf32>
    %136 = arith.addf %129, %135 : vector<16x128xf32>
    %cst_37 = arith.constant 0.797884583 : f32
    %137 = vector.broadcast %cst_37 : f32 to vector<16x128xf32>
    %138 = arith.mulf %137, %136 : vector<16x128xf32>
    %139 = math.tanh %138 : vector<16x128xf32>
    %cst_38 = arith.constant 1.000000e+00 : f32
    %140 = vector.broadcast %cst_38 : f32 to vector<16x128xf32>
    %141 = arith.addf %140, %139 : vector<16x128xf32>
    %142 = arith.mulf %131, %141 : vector<16x128xf32>
    %c0_39 = arith.constant 0 : index
    %c0_40 = arith.constant 0 : index
    %143 = vector.load %arg3[%c0_39, %c0_40] : memref<128x32xf32, #tpu.memory_space<vmem>>, vector<128x32xf32>
    %cst_41 = arith.constant dense<0.000000e+00> : vector<16x32xf32>
    %144 = tpu.matmul %142, %143, %cst_41 {dimension_numbers = #tpu.dot_dimension_numbers<[1], [0], [0], [1], [0, 0, 1, 1], [], []>} : vector<16x128xf32>, vector<128x32xf32>, vector<16x32xf32> -> vector<16x32xf32>
    %145 = vector.broadcast %9 : vector<1x32xf32> to vector<16x32xf32>
    %146 = arith.addf %144, %145 : vector<16x32xf32>
    %147 = arith.addf %110, %146 : vector<16x32xf32>
    %c0_42 = arith.constant 0 : index
    %c0_43 = arith.constant 0 : index
    %148 = vector.load %arg5[%c0_42, %c0_43] : memref<16x32xf32, #tpu.memory_space<vmem>>, vector<16x32xf32>
    tpu.vector_store %arg5[%c0_42, %c0_43], %147 {strides = array<i32>} : memref<16x32xf32, #tpu.memory_space<vmem>>, vector<16x32xf32>,
    return
  }
  func.func @transform_0(%arg0: i32) -> (i32, i32) {
    %c0_i32 = arith.constant 0 : i32
    %c0_i32_0 = arith.constant 0 : i32
    %c0_i32_1 = arith.constant 0 : i32
    return %c0_i32, %c0_i32_0 : i32, i32
  }
  func.func @transform_1(%arg0: i32) -> (i32, i32) {
    %c0_i32 = arith.constant 0 : i32
    %c0_i32_0 = arith.constant 0 : i32
    %c0_i32_1 = arith.constant 0 : i32
    return %c0_i32, %c0_i32_0 : i32, i32
  }
  func.func @transform_2(%arg0: i32) -> (i32, i32) {
    %c0_i32 = arith.constant 0 : i32
    %c0_i32_0 = arith.constant 0 : i32
    %c0_i32_1 = arith.constant 0 : i32
    return %c0_i32, %c0_i32_0 : i32, i32
  }
  func.func @transform_3(%arg0: i32) -> (i32, i32) {
    %c0_i32 = arith.constant 0 : i32
    %c0_i32_0 = arith.constant 0 : i32
    %c0_i32_1 = arith.constant 0 : i32
    return %c0_i32, %c0_i32_0 : i32, i32
  }
  func.func @transform_4(%arg0: i32) -> (i32, i32) {
    %c0_i32 = arith.constant 0 : i32
    %c0_i32_0 = arith.constant 0 : i32
    %c0_i32_1 = arith.constant 0 : i32
    return %c0_i32, %c0_i32_0 : i32, i32
  }
}

</mosaic_0001>

<llo_original>
// kernel: tpu_custom_call.1
$region0: #{tpu_custom_call.1}
  #allocation0 [shape = 'u32[]', space=smem, size = 0x4, offset = 0x4, fixed_abs, tag = 'smem constant byte address 0x4 - core index']
  #allocation1 [shape = 'u32[144,128]{1,0:T(1,128)}', space=vmem, size = 0x12000, scoped, tag = 'internal scratch']
  %s0 = inlined_call_operand.vmem [shape: f32[16,32], index: 0, kind: input, shape index: {}]
  %s1 = inlined_call_operand.vmem [shape: f32[32,256], index: 1, kind: input, shape index: {}]
  %s2 = inlined_call_operand.vmem [shape: f32[128,32], index: 2, kind: input, shape index: {}]
  %s3 = inlined_call_operand.vmem [shape: f32[4,128], index: 3, kind: input, shape index: {}]
  %s4 = inlined_call_operand.hbm [shape: f32[16,32], index: 4, kind: output, shape index: {}]
  %s5 = sld [smem:[#allocation0]]
  $region26: #{tpu_custom_call.1} parent=0
    _
  %s7 = ssub.s32 1, %s5
  %s8 = scalar_select 0, %s7, %s5
  $region1: #{tpu_custom_call.1} parent=0
    #allocation2 [shape = 'u8[8192]{0}', space=vmem, size = 0x2000, scoped, tag = 'output window, operand 0, single buffered']
    #allocation3 [shape = 's32[1]{0}', space=sflag, size = 0x4, scoped, tag = 'scoped memory for tpu_custom_call.1']
    %9 = vsyncpa [#allocation3], 0
    // Predicated region
    $region2: #{tpu_custom_call.1} parent=1 // pred_check
      _
    $region3: #{tpu_custom_call.1} parent=1 // pred_check_branch
      %11 = sbr.rel (0) target = $region5
    $region4: #{tpu_custom_call.1} parent=1 // pred_region
      _
    $region5: #{tpu_custom_call.1} parent=1 // pred_fallthru
      _
    // Predicated region
    $region6: #{tpu_custom_call.1} parent=1 // pred_check
      _
    $region7: #{tpu_custom_call.1} parent=1 // pred_check_branch
      %13 = sbr.rel (0) target = $region9
    $region8: #{tpu_custom_call.1} parent=1 // pred_region
      _
    $region9: #{tpu_custom_call.1} parent=1 // pred_fallthru
      _
    // Predicated region
    $region10: #{tpu_custom_call.1} parent=1 // pred_check
      _
    $region11: #{tpu_custom_call.1} parent=1 // pred_check_branch
      %15 = sbr.rel (0) target = $region13
    $region12: #{tpu_custom_call.1} parent=1 // pred_region
      _
    $region13: #{tpu_custom_call.1} parent=1 // pred_fallthru
      _
    // Predicated region
    $region14: #{tpu_custom_call.1} parent=1 // pred_check
      _
    $region15: #{tpu_custom_call.1} parent=1 // pred_check_branch
      %17 = sbr.rel (0) target = $region17
    $region16: #{tpu_custom_call.1} parent=1 // pred_region
      _
    $region17: #{tpu_custom_call.1} parent=1 // pred_fallthru
      _
    %v18 = vld [vmem:[%s0] sm:$0xff]
    %v19 = vld [vmem:[%s0 + $0x8] sm:$0xff]
    %v20 = vld [vmem:[%s1] sm:$0xff]
    %v21 = vld [vmem:[%s1 + $0x8] sm:$0xff]
    %v22 = vld [vmem:[%s1 + $0x10] sm:$0xff]
    %v23 = vld [vmem:[%s1 + $0x18] sm:$0xff]
    %v24 = vld [vmem:[%s1 + $0x20] sm:$0xff]
    %v25 = vld [vmem:[%s1 + $0x28] sm:$0xff]
    %v26 = vld [vmem:[%s1 + $0x30] sm:$0xff]
    %v27 = vld [vmem:[%s1 + $0x38] sm:$0xff]
    %v28 = vld [vmem:[%s3] sm:$0xf]
    %vm29 = vcmask 261120
    %v30 = vsel %vm29, %v18, 0.0
    %31 = vadd.xlane.f32.xlu0 %v30
    %v32 = vpop.xlane.xlu0 %31
    %v33 = vsel %vm29, %v19, 0.0
    %34 = vadd.xlane.f32.xlu0 %v33
    %v35 = vpop.xlane.xlu0 %34
    %v36 = vrcp.pop 32.0
    %v37 = vmul.f32 %v32, %v36
    %v38 = vmul.f32 %v35, %v36
    %v39 = vsub.f32 %v18, %v37
    %v40 = vsub.f32 %v19, %v38
    %v41 = vmul.f32 %v39, %v39
    %v42 = vmul.f32 %v40, %v40
    %v43 = vsel %vm29, %v41, 0.0
    %44 = vadd.xlane.f32.xlu0 %v43
    %v45 = vpop.xlane.xlu0 %44
    %v46 = vsel %vm29, %v42, 0.0
    %47 = vadd.xlane.f32.xlu0 %v46
    %v48 = vpop.xlane.xlu0 %47
    %v49 = vmul.f32 %v45, %v36
    %v50 = vmul.f32 %v48, %v36
    %v51 = vadd.f32 %v49, 1e-05
    %v52 = vadd.f32 %v50, 1e-05
    %v53 = vrsqrt.pop %v51
    %v54 = vrsqrt.pop %v52
    %v55 = vmul.f32 %v39, %v53
    %v56 = vmul.f32 %v40, %v54
    %v57 = vlaneseq
    %v58 = vshrl.u32 %v57, 7
    %v59 = vsub.s32 0, %v58
    %v60 = vrot.slane %v28, %v59
    %v62 = vsel %vm29, %v55, 0
    %v65 = vsel %vm29, %v56, 0
    %67 = vmatprep.subr.mxu0 0.0
    %68 = vmatpush1.msra.mxu0 %v20
    %69 = vmatprep.subr.mxu0 0.0
    %70 = vmatpush1.msra.mxu0 %v22
    %71 = vmatprep.subr.mxu0 0.0
    %72 = vmatpush1.msra.mxu0 %v24
    %73 = vmatprep.subr.mxu0 0.0
    %74 = vmatpush1.msra.mxu0 %v26
    %75 = vmatprep.subr.mxu0 0.0
    %76 = vmatpush1.msra.mxu0 0.0
    %77 = vmatprep.subr.mxu0 0.0
    %78 = vmatpush1.msra.mxu0 0.0
    %79 = vmatprep.subr.mxu0 0.0
    %80 = vmatpush1.msra.mxu0 0.0
    %81 = vmatprep.subr.mxu0 0.0
    %82 = vmatpush1.msra.mxu0 0.0
    %83 = vmatprep.subr.mxu0 0.0
    %84 = vmatpush1.msra.mxu0 0.0
    %85 = vmatprep.subr.mxu0 0.0
    %86 = vmatpush1.msra.mxu0 0.0
    %87 = vmatprep.subr.mxu0 0.0
    %88 = vmatpush1.msra.mxu0 0.0
    %89 = vmatprep.subr.mxu0 0.0
    %90 = vmatpush1.msra.mxu0 0.0
    %91 = vmatprep.subr.mxu0 0.0
    %92 = vmatpush1.msra.mxu0 0.0
    %93 = vmatprep.subr.mxu0 0.0
    %94 = vmatpush1.msra.mxu0 0.0
    %95 = vmatprep.subr.mxu0 0.0
    %96 = vmatpush1.msra.mxu0 0.0
    %97 = vmatprep.subr.mxu0 0.0
    %98 = vmatpush1.msra.mxu0 0.0
    %99 = vmatprep.subr.mxu0 0.0
    %100 = vmatpush1.msra.mxu0 0.0
    %101 = vmatprep.subr.mxu0 0.0
    %102 = vmatpush1.msra.mxu0 0.0
    %103 = vmatprep.subr.mxu0 0.0
    %104 = vmatpush1.msra.mxu0 0.0
    %105 = vmatprep.subr.mxu0 0.0
    %106 = vmatpush1.msra.mxu0 0.0
    %107 = vmatprep.subr.mxu0 0.0
    %108 = vmatpush1.msra.mxu0 0.0
    %109 = vmatprep.subr.mxu0 0.0
    %110 = vmatpush1.msra.mxu0 0.0
    %111 = vmatprep.subr.mxu0 0.0
    %112 = vmatpush1.msra.mxu0 0.0
    %113 = vmatprep.subr.mxu0 0.0
    %114 = vmatpush1.msra.mxu0 0.0
    %115 = vmatprep.subr.mxu0 0.0
    %116 = vmatpush1.msra.mxu0 0.0
    %117 = vmatprep.subr.mxu0 0.0
    %118 = vmatpush1.msra.mxu0 0.0
    %119 = vmatprep.subr.mxu0 0.0
    %120 = vmatpush1.msra.mxu0 0.0
    %121 = vmatprep.subr.mxu0 0.0
    %122 = vmatpush1.msra.mxu0 0.0
    %123 = vmatprep.subr.mxu0 0.0
    %124 = vmatpush1.msra.mxu0 0.0
    %125 = vmatprep.subr.mxu0 0.0
    %126 = vmatpush1.msra.mxu0 0.0
    %127 = vmatprep.subr.mxu0 0.0
    %128 = vmatpush1.msra.mxu0 0.0
    %129 = vmatprep.subr.mxu0 0.0
    %130 = vmatpush1.msra.mxu0 0.0
    %131 = vmatprep.mubr.f32.mxu0 0.0
    %132 = vmatmul.mubr.f32.gmra.mrb[0].mxu0 %v62
    %v133 = vpop.f32.mrb[0].mxu0
    %v134 = vadd.f32 %v60, %v133
    %v135 = vpop.f32.mrb[0].mxu0
    %136 = vmatprep.mubr.f32.mxu0 0.0
    %137 = vmatmul.mubr.f32.gmra.mrb[0].mxu0 %v65
    %v138 = vpop.f32.mrb[0].mxu0
    %v139 = vadd.f32 %v60, %v138
    %v140 = vpop.f32.mrb[0].mxu0
    %141 = vdwg.mxu0
    %v142 = vlaneseq
    %v143 = vshrl.u32 %v142, 7
    %v144 = vlaneseq
    %v145 = vand.u32 %v144, 127
    %vm146 = vcmp.ge.s32.totalorder %v143, %v145
    %v147 = vsel %vm146, 0.0, -1e+30
    %149 = vrot.lane.b32.xlu0 %v134, 96
    %v150 = vpop.permute.xlu0 %149
    %vm151 = vcmask 64512
    %v152 = vsel %vm151, %v134, 0
    %v154 = vsel %vm151, %v150, 0
    %156 = vmatprep.subr.mxu0 0.0
    %157 = vmatpush1.xpose.msra.mxu0 %v154
    %158 = vmatprep.subr.mxu0 0.0
    %159 = vmatpush1.xpose.msra.mxu0 0.0
    %160 = vmatprep.subr.mxu0 0.0
    %161 = vmatpush1.xpose.msra.mxu0 0.0
    %162 = vmatprep.subr.mxu0 0.0
    %163 = vmatpush1.xpose.msra.mxu0 0.0
    %164 = vmatprep.subr.mxu0 0.0
    %165 = vmatpush1.xpose.msra.mxu0 0.0
    %166 = vmatprep.subr.mxu0 0.0
    %167 = vmatpush1.xpose.msra.mxu0 0.0
    %168 = vmatprep.subr.mxu0 0.0
    %169 = vmatpush1.xpose.msra.mxu0 0.0
    %170 = vmatprep.subr.mxu0 0.0
    %171 = vmatpush1.xpose.msra.mxu0 0.0
    %172 = vmatprep.subr.mxu0 0.0
    %173 = vmatpush1.xpose.msra.mxu0 0.0
    %174 = vmatprep.subr.mxu0 0.0
    %175 = vmatpush1.xpose.msra.mxu0 0.0
    %176 = vmatprep.subr.mxu0 0.0
    %177 = vmatpush1.xpose.msra.mxu0 0.0
    %178 = vmatprep.subr.mxu0 0.0
    %179 = vmatpush1.xpose.msra.mxu0 0.0
    %180 = vmatprep.subr.mxu0 0.0
    %181 = vmatpush1.xpose.msra.mxu0 0.0
    %182 = vmatprep.subr.mxu0 0.0
    %183 = vmatpush1.xpose.msra.mxu0 0.0
    %184 = vmatprep.subr.mxu0 0.0
    %185 = vmatpush1.xpose.msra.mxu0 0.0
    %186 = vmatprep.subr.mxu0 0.0
    %187 = vmatpush1.xpose.msra.mxu0 0.0
    %188 = vmatprep.subr.mxu0 0.0
    %189 = vmatpush1.xpose.msra.mxu0 0.0
    %190 = vmatprep.subr.mxu0 0.0
    %191 = vmatpush1.xpose.msra.mxu0 0.0
    %192 = vmatprep.subr.mxu0 0.0
    %193 = vmatpush1.xpose.msra.mxu0 0.0
    %194 = vmatprep.subr.mxu0 0.0
    %195 = vmatpush1.xpose.msra.mxu0 0.0
    %196 = vmatprep.subr.mxu0 0.0
    %197 = vmatpush1.xpose.msra.mxu0 0.0
    %198 = vmatprep.subr.mxu0 0.0
    %199 = vmatpush1.xpose.msra.mxu0 0.0
    %200 = vmatprep.subr.mxu0 0.0
    %201 = vmatpush1.xpose.msra.mxu0 0.0
    %202 = vmatprep.subr.mxu0 0.0
    %203 = vmatpush1.xpose.msra.mxu0 0.0
    %204 = vmatprep.subr.mxu0 0.0
    %205 = vmatpush1.xpose.msra.mxu0 0.0
    %206 = vmatprep.subr.mxu0 0.0
    %207 = vmatpush1.xpose.msra.mxu0 0.0
    %208 = vmatprep.subr.mxu0 0.0
    %209 = vmatpush1.xpose.msra.mxu0 0.0
    %210 = vmatprep.subr.mxu0 0.0
    %211 = vmatpush1.xpose.msra.mxu0 0.0
    %212 = vmatprep.subr.mxu0 0.0
    %213 = vmatpush1.xpose.msra.mxu0 0.0
    %214 = vmatprep.subr.mxu0 0.0
    %215 = vmatpush1.xpose.msra.mxu0 0.0
    %216 = vmatprep.subr.mxu0 0.0
    %217 = vmatpush1.xpose.msra.mxu0 0.0
    %218 = vmatprep.subr.mxu0 0.0
    %219 = vmatpush1.xpose.msra.mxu0 0.0
    %220 = vmatprep.mubr.f32.mxu0 0.0
    %221 = vmatmul.mubr.f32.gmra.mrb[0].mxu0 %v152
    %v222 = vpop.f32.mrb[0].mxu0
    %v223 = vadd.f32 %v147, %v222
    %v224 = vpop.f32.mrb[0].mxu0
    %225 = vdwg.mxu0
    %227 = vrot.lane.b32.xlu0 %v139, 96
    %v228 = vpop.permute.xlu0 %227
    %v229 = vsel %vm151, %v139, 0
    %v231 = vsel %vm151, %v228, 0
    %233 = vmatprep.subr.mxu0 0.0
    %234 = vmatpush1.xpose.msra.mxu0 %v231
    %235 = vmatprep.subr.mxu0 0.0
    %236 = vmatpush1.xpose.msra.mxu0 0.0
    %237 = vmatprep.subr.mxu0 0.0
    %238 = vmatpush1.xpose.msra.mxu0 0.0
    %239 = vmatprep.subr.mxu0 0.0
    %240 = vmatpush1.xpose.msra.mxu0 0.0
    %241 = vmatprep.subr.mxu0 0.0
    %242 = vmatpush1.xpose.msra.mxu0 0.0
    %243 = vmatprep.subr.mxu0 0.0
    %244 = vmatpush1.xpose.msra.mxu0 0.0
    %245 = vmatprep.subr.mxu0 0.0
    %246 = vmatpush1.xpose.msra.mxu0 0.0
    %247 = vmatprep.subr.mxu0 0.0
    %248 = vmatpush1.xpose.msra.mxu0 0.0
    %249 = vmatprep.subr.mxu0 0.0
    %250 = vmatpush1.xpose.msra.mxu0 0.0
    %251 = vmatprep.subr.mxu0 0.0
    %252 = vmatpush1.xpose.msra.mxu0 0.0
    %253 = vmatprep.subr.mxu0 0.0
    %254 = vmatpush1.xpose.msra.mxu0 0.0
    %255 = vmatprep.subr.mxu0 0.0
    %256 = vmatpush1.xpose.msra.mxu0 0.0
    %257 = vmatprep.subr.mxu0 0.0
    %258 = vmatpush1.xpose.msra.mxu0 0.0
    %259 = vmatprep.subr.mxu0 0.0
    %260 = vmatpush1.xpose.msra.mxu0 0.0
    %261 = vmatprep.subr.mxu0 0.0
    %262 = vmatpush1.xpose.msra.mxu0 0.0
    %263 = vmatprep.subr.mxu0 0.0
    %264 = vmatpush1.xpose.msra.mxu0 0.0
    %265 = vmatprep.subr.mxu0 0.0
    %266 = vmatpush1.xpose.msra.mxu0 0.0
    %267 = vmatprep.subr.mxu0 0.0
    %268 = vmatpush1.xpose.msra.mxu0 0.0
    %269 = vmatprep.subr.mxu0 0.0
    %270 = vmatpush1.xpose.msra.mxu0 0.0
    %271 = vmatprep.subr.mxu0 0.0
    %272 = vmatpush1.xpose.msra.mxu0 0.0
    %273 = vmatprep.subr.mxu0 0.0
    %274 = vmatpush1.xpose.msra.mxu0 0.0
    %275 = vmatprep.subr.mxu0 0.0
    %276 = vmatpush1.xpose.msra.mxu0 0.0
    %277 = vmatprep.subr.mxu0 0.0
    %278 = vmatpush1.xpose.msra.mxu0 0.0
    %279 = vmatprep.subr.mxu0 0.0
    %280 = vmatpush1.xpose.msra.mxu0 0.0
    %281 = vmatprep.subr.mxu0 0.0
    %282 = vmatpush1.xpose.msra.mxu0 0.0
    %283 = vmatprep.subr.mxu0 0.0
    %284 = vmatpush1.xpose.msra.mxu0 0.0
    %285 = vmatprep.subr.mxu0 0.0
    %286 = vmatpush1.xpose.msra.mxu0 0.0
    %287 = vmatprep.subr.mxu0 0.0
    %288 = vmatpush1.xpose.msra.mxu0 0.0
    %289 = vmatprep.subr.mxu0 0.0
    %290 = vmatpush1.xpose.msra.mxu0 0.0
    %291 = vmatprep.subr.mxu0 0.0
    %292 = vmatpush1.xpose.msra.mxu0 0.0
    %293 = vmatprep.subr.mxu0 0.0
    %294 = vmatpush1.xpose.msra.mxu0 0.0
    %295 = vmatprep.subr.mxu0 0.0
    %296 = vmatpush1.xpose.msra.mxu0 0.0
    %297 = vmatprep.mubr.f32.mxu0 0.0
    %298 = vmatmul.mubr.f32.gmra.mrb[0].mxu0 %v229
    %v299 = vpop.f32.mrb[0].mxu0
    %v300 = vadd.f32 %v147, %v299
    %v301 = vpop.f32.mrb[0].mxu0
    %302 = vdwg.mxu0
    %v303 = vsel %vm151, %v223, -inf
    %304 = vmax.xlane.f32.xlu0 %v303
    %v305 = vpop.xlane.xlu0 %304
    %v306 = vsel %vm151, %v300, -inf
    %307 = vmax.xlane.f32.xlu0 %v306
    %v308 = vpop.xlane.xlu0 %307
    %v309 = vsub.f32 %v223, %v305
    %v310 = vsub.f32 %v300, %v308
    %v311 = vmul.f32 %v309, 1.442695
    %v312 = vpow.pop %v311
    %v313 = vmul.f32 %v310, 1.442695
    %v314 = vpow.pop %v313
    %v315 = vsel %vm151, %v312, 0.0
    %316 = vadd.xlane.f32.xlu0 %v315
    %v317 = vpop.xlane.xlu0 %316
    %v318 = vsel %vm151, %v314, 0.0
    %319 = vadd.xlane.f32.xlu0 %v318
    %v320 = vpop.xlane.xlu0 %319
    %v321 = vrcp.pop %v317
    %v322 = vrcp.pop %v320
    %v323 = vmul.f32 %v312, %v321
    %v324 = vmul.f32 %v314, %v322
    %325 = vrot.lane.b32.xlu0 %v134, 64
    %v326 = vpop.permute.xlu0 %325
    %v329 = vsel %vm151, %v323, 0
    %331 = vmatprep.subr.mxu0 0.0
    %332 = vmatpush1.msra.mxu0 %v326
    %333 = vmatprep.subr.mxu0 0.0
    %334 = vmatpush1.msra.mxu0 0.0
    %335 = vmatprep.subr.mxu0 0.0
    %336 = vmatpush1.msra.mxu0 0.0
    %337 = vmatprep.subr.mxu0 0.0
    %338 = vmatpush1.msra.mxu0 0.0
    %339 = vmatprep.subr.mxu0 0.0
    %340 = vmatpush1.msra.mxu0 0.0
    %341 = vmatprep.subr.mxu0 0.0
    %342 = vmatpush1.msra.mxu0 0.0
    %343 = vmatprep.subr.mxu0 0.0
    %344 = vmatpush1.msra.mxu0 0.0
    %345 = vmatprep.subr.mxu0 0.0
    %346 = vmatpush1.msra.mxu0 0.0
    %347 = vmatprep.subr.mxu0 0.0
    %348 = vmatpush1.msra.mxu0 0.0
    %349 = vmatprep.subr.mxu0 0.0
    %350 = vmatpush1.msra.mxu0 0.0
    %351 = vmatprep.subr.mxu0 0.0
    %352 = vmatpush1.msra.mxu0 0.0
    %353 = vmatprep.subr.mxu0 0.0
    %354 = vmatpush1.msra.mxu0 0.0
    %355 = vmatprep.subr.mxu0 0.0
    %356 = vmatpush1.msra.mxu0 0.0
    %357 = vmatprep.subr.mxu0 0.0
    %358 = vmatpush1.msra.mxu0 0.0
    %359 = vmatprep.subr.mxu0 0.0
    %360 = vmatpush1.msra.mxu0 0.0
    %361 = vmatprep.subr.mxu0 0.0
    %362 = vmatpush1.msra.mxu0 0.0
    %363 = vmatprep.subr.mxu0 0.0
    %364 = vmatpush1.msra.mxu0 0.0
    %365 = vmatprep.subr.mxu0 0.0
    %366 = vmatpush1.msra.mxu0 0.0
    %367 = vmatprep.subr.mxu0 0.0
    %368 = vmatpush1.msra.mxu0 0.0
    %369 = vmatprep.subr.mxu0 0.0
    %370 = vmatpush1.msra.mxu0 0.0
    %371 = vmatprep.subr.mxu0 0.0
    %372 = vmatpush1.msra.mxu0 0.0
    %373 = vmatprep.subr.mxu0 0.0
    %374 = vmatpush1.msra.mxu0 0.0
    %375 = vmatprep.subr.mxu0 0.0
    %376 = vmatpush1.msra.mxu0 0.0
    %377 = vmatprep.subr.mxu0 0.0
    %378 = vmatpush1.msra.mxu0 0.0
    %379 = vmatprep.subr.mxu0 0.0
    %380 = vmatpush1.msra.mxu0 0.0
    %381 = vmatprep.subr.mxu0 0.0
    %382 = vmatpush1.msra.mxu0 0.0
    %383 = vmatprep.subr.mxu0 0.0
    %384 = vmatpush1.msra.mxu0 0.0
    %385 = vmatprep.subr.mxu0 0.0
    %386 = vmatpush1.msra.mxu0 0.0
    %387 = vmatprep.subr.mxu0 0.0
    %388 = vmatpush1.msra.mxu0 0.0
    %389 = vmatprep.subr.mxu0 0.0
    %390 = vmatpush1.msra.mxu0 0.0
    %391 = vmatprep.subr.mxu0 0.0
    %392 = vmatpush1.msra.mxu0 0.0
    %393 = vmatprep.subr.mxu0 0.0
    %394 = vmatpush1.msra.mxu0 0.0
    %395 = vmatprep.mubr.f32.mxu0 0.0
    %396 = vmatmul.mubr.f32.gmra.mrb[0].mxu0 %v329
    %v397 = vpop.f32.mrb[0].mxu0
    %v398 = vadd.f32 0.0, %v397
    %v399 = vpop.f32.mrb[0].mxu0
    %400 = vdwg.mxu0
    %401 = vrot.lane.b32.xlu0 %v139, 64
    %v402 = vpop.permute.xlu0 %401
    %v405 = vsel %vm151, %v324, 0
    %407 = vmatprep.subr.mxu0 0.0
    %408 = vmatpush1.msra.mxu0 %v402
    %409 = vmatprep.subr.mxu0 0.0
    %410 = vmatpush1.msra.mxu0 0.0
    %411 = vmatprep.subr.mxu0 0.0
    %412 = vmatpush1.msra.mxu0 0.0
    %413 = vmatprep.subr.mxu0 0.0
    %414 = vmatpush1.msra.mxu0 0.0
    %415 = vmatprep.subr.mxu0 0.0
    %416 = vmatpush1.msra.mxu0 0.0
    %417 = vmatprep.subr.mxu0 0.0
    %418 = vmatpush1.msra.mxu0 0.0
    %419 = vmatprep.subr.mxu0 0.0
    %420 = vmatpush1.msra.mxu0 0.0
    %421 = vmatprep.subr.mxu0 0.0
    %422 = vmatpush1.msra.mxu0 0.0
    %423 = vmatprep.subr.mxu0 0.0
    %424 = vmatpush1.msra.mxu0 0.0
    %425 = vmatprep.subr.mxu0 0.0
    %426 = vmatpush1.msra.mxu0 0.0
    %427 = vmatprep.subr.mxu0 0.0
    %428 = vmatpush1.msra.mxu0 0.0
    %429 = vmatprep.subr.mxu0 0.0
    %430 = vmatpush1.msra.mxu0 0.0
    %431 = vmatprep.subr.mxu0 0.0
    %432 = vmatpush1.msra.mxu0 0.0
    %433 = vmatprep.subr.mxu0 0.0
    %434 = vmatpush1.msra.mxu0 0.0
    %435 = vmatprep.subr.mxu0 0.0
    %436 = vmatpush1.msra.mxu0 0.0
    %437 = vmatprep.subr.mxu0 0.0
    %438 = vmatpush1.msra.mxu0 0.0
    %439 = vmatprep.subr.mxu0 0.0
    %440 = vmatpush1.msra.mxu0 0.0
    %441 = vmatprep.subr.mxu0 0.0
    %442 = vmatpush1.msra.mxu0 0.0
    %443 = vmatprep.subr.mxu0 0.0
    %444 = vmatpush1.msra.mxu0 0.0
    %445 = vmatprep.subr.mxu0 0.0
    %446 = vmatpush1.msra.mxu0 0.0
    %447 = vmatprep.subr.mxu0 0.0
    %448 = vmatpush1.msra.mxu0 0.0
    %449 = vmatprep.subr.mxu0 0.0
    %450 = vmatpush1.msra.mxu0 0.0
    %451 = vmatprep.subr.mxu0 0.0
    %452 = vmatpush1.msra.mxu0 0.0
    %453 = vmatprep.subr.mxu0 0.0
    %454 = vmatpush1.msra.mxu0 0.0
    %455 = vmatprep.subr.mxu0 0.0
    %456 = vmatpush1.msra.mxu0 0.0
    %457 = vmatprep.subr.mxu0 0.0
    %458 = vmatpush1.msra.mxu0 0.0
    %459 = vmatprep.subr.mxu0 0.0
    %460 = vmatpush1.msra.mxu0 0.0
    %461 = vmatprep.subr.mxu0 0.0
    %462 = vmatpush1.msra.mxu0 0.0
    %463 = vmatprep.subr.mxu0 0.0
    %464 = vmatpush1.msra.mxu0 0.0
    %465 = vmatprep.subr.mxu0 0.0
    %466 = vmatpush1.msra.mxu0 0.0
    %467 = vmatprep.subr.mxu0 0.0
    %468 = vmatpush1.msra.mxu0 0.0
    %469 = vmatprep.subr.mxu0 0.0
    %470 = vmatpush1.msra.mxu0 0.0
    %471 = vmatprep.mubr.f32.mxu0 0.0
    %472 = vmatmul.mubr.f32.gmra.mrb[0].mxu0 %v405
    %v473 = vpop.f32.mrb[0].mxu0
    %v474 = vadd.f32 0.0, %v473
    %v475 = vpop.f32.mrb[0].mxu0
    %476 = vdwg.mxu0
    %477 = vrot.lane.b32.xlu0 %v134, 120
    %v478 = vpop.permute.xlu0 %477
    %479 = vrot.lane.b32.xlu0 %v134, 88
    %v480 = vpop.permute.xlu0 %479
    %v481 = vsel %vm151, %v478, 0
    %v483 = vsel %vm151, %v480, 0
    %485 = vmatprep.subr.mxu0 0.0
    %486 = vmatpush1.xpose.msra.mxu0 %v483
    %487 = vmatprep.subr.mxu0 0.0
    %488 = vmatpush1.xpose.msra.mxu0 0.0
    %489 = vmatprep.subr.mxu0 0.0
    %490 = vmatpush1.xpose.msra.mxu0 0.0
    %491 = vmatprep.subr.mxu0 0.0
    %492 = vmatpush1.xpose.msra.mxu0 0.0
    %493 = vmatprep.subr.mxu0 0.0
    %494 = vmatpush1.xpose.msra.mxu0 0.0
    %495 = vmatprep.subr.mxu0 0.0
    %496 = vmatpush1.xpose.msra.mxu0 0.0
    %497 = vmatprep.subr.mxu0 0.0
    %498 = vmatpush1.xpose.msra.mxu0 0.0
    %499 = vmatprep.subr.mxu0 0.0
    %500 = vmatpush1.xpose.msra.mxu0 0.0
    %501 = vmatprep.subr.mxu0 0.0
    %502 = vmatpush1.xpose.msra.mxu0 0.0
    %503 = vmatprep.subr.mxu0 0.0
    %504 = vmatpush1.xpose.msra.mxu0 0.0
    %505 = vmatprep.subr.mxu0 0.0
    %506 = vmatpush1.xpose.msra.mxu0 0.0
    %507 = vmatprep.subr.mxu0 0.0
    %508 = vmatpush1.xpose.msra.mxu0 0.0
    %509 = vmatprep.subr.mxu0 0.0
    %510 = vmatpush1.xpose.msra.mxu0 0.0
    %511 = vmatprep.subr.mxu0 0.0
    %512 = vmatpush1.xpose.msra.mxu0 0.0
    %513 = vmatprep.subr.mxu0 0.0
    %514 = vmatpush1.xpose.msra.mxu0 0.0
    %515 = vmatprep.subr.mxu0 0.0
    %516 = vmatpush1.xpose.msra.mxu0 0.0
    %517 = vmatprep.subr.mxu0 0.0
    %518 = vmatpush1.xpose.msra.mxu0 0.0
    %519 = vmatprep.subr.mxu0 0.0
    %520 = vmatpush1.xpose.msra.mxu0 0.0
    %521 = vmatprep.subr.mxu0 0.0
    %522 = vmatpush1.xpose.msra.mxu0 0.0
    %523 = vmatprep.subr.mxu0 0.0
    %524 = vmatpush1.xpose.msra.mxu0 0.0
    %525 = vmatprep.subr.mxu0 0.0
    %526 = vmatpush1.xpose.msra.mxu0 0.0
    %527 = vmatprep.subr.mxu0 0.0
    %528 = vmatpush1.xpose.msra.mxu0 0.0
    %529 = vmatprep.subr.mxu0 0.0
    %530 = vmatpush1.xpose.msra.mxu0 0.0
    %531 = vmatprep.subr.mxu0 0.0
    %532 = vmatpush1.xpose.msra.mxu0 0.0
    %533 = vmatprep.subr.mxu0 0.0
    %534 = vmatpush1.xpose.msra.mxu0 0.0
    %535 = vmatprep.subr.mxu0 0.0
    %536 = vmatpush1.xpose.msra.mxu0 0.0
    %537 = vmatprep.subr.mxu0 0.0
    %538 = vmatpush1.xpose.msra.mxu0 0.0
    %539 = vmatprep.subr.mxu0 0.0
    %540 = vmatpush1.xpose.msra.mxu0 0.0
    %541 = vmatprep.subr.mxu0 0.0
    %542 = vmatpush1.xpose.msra.mxu0 0.0
    %543 = vmatprep.subr.mxu0 0.0
    %544 = vmatpush1.xpose.msra.mxu0 0.0
    %545 = vmatprep.subr.mxu0 0.0
    %546 = vmatpush1.xpose.msra.mxu0 0.0
    %547 = vmatprep.subr.mxu0 0.0
    %548 = vmatpush1.xpose.msra.mxu0 0.0
    %549 = vmatprep.mubr.f32.mxu0 0.0
    %550 = vmatmul.mubr.f32.gmra.mrb[0].mxu0 %v481
    %v551 = vpop.f32.mrb[0].mxu0
    %v552 = vadd.f32 %v147, %v551
    %v553 = vpop.f32.mrb[0].mxu0
    %554 = vdwg.mxu0
    %555 = vrot.lane.b32.xlu0 %v139, 120
    %v556 = vpop.permute.xlu0 %555
    %557 = vrot.lane.b32.xlu0 %v139, 88
    %v558 = vpop.permute.xlu0 %557
    %v559 = vsel %vm151, %v556, 0
    %v561 = vsel %vm151, %v558, 0
    %563 = vmatprep.subr.mxu0 0.0
    %564 = vmatpush1.xpose.msra.mxu0 %v561
    %565 = vmatprep.subr.mxu0 0.0
    %566 = vmatpush1.xpose.msra.mxu0 0.0
    %567 = vmatprep.subr.mxu0 0.0
    %568 = vmatpush1.xpose.msra.mxu0 0.0
    %569 = vmatprep.subr.mxu0 0.0
    %570 = vmatpush1.xpose.msra.mxu0 0.0
    %571 = vmatprep.subr.mxu0 0.0
    %572 = vmatpush1.xpose.msra.mxu0 0.0
    %573 = vmatprep.subr.mxu0 0.0
    %574 = vmatpush1.xpose.msra.mxu0 0.0
    %575 = vmatprep.subr.mxu0 0.0
    %576 = vmatpush1.xpose.msra.mxu0 0.0
    %577 = vmatprep.subr.mxu0 0.0
    %578 = vmatpush1.xpose.msra.mxu0 0.0
    %579 = vmatprep.subr.mxu0 0.0
    %580 = vmatpush1.xpose.msra.mxu0 0.0
    %581 = vmatprep.subr.mxu0 0.0
    %582 = vmatpush1.xpose.msra.mxu0 0.0
    %583 = vmatprep.subr.mxu0 0.0
    %584 = vmatpush1.xpose.msra.mxu0 0.0
    %585 = vmatprep.subr.mxu0 0.0
    %586 = vmatpush1.xpose.msra.mxu0 0.0
    %587 = vmatprep.subr.mxu0 0.0
    %588 = vmatpush1.xpose.msra.mxu0 0.0
    %589 = vmatprep.subr.mxu0 0.0
    %590 = vmatpush1.xpose.msra.mxu0 0.0
    %591 = vmatprep.subr.mxu0 0.0
    %592 = vmatpush1.xpose.msra.mxu0 0.0
    %593 = vmatprep.subr.mxu0 0.0
    %594 = vmatpush1.xpose.msra.mxu0 0.0
    %595 = vmatprep.subr.mxu0 0.0
    %596 = vmatpush1.xpose.msra.mxu0 0.0
    %597 = vmatprep.subr.mxu0 0.0
    %598 = vmatpush1.xpose.msra.mxu0 0.0
    %599 = vmatprep.subr.mxu0 0.0
    %600 = vmatpush1.xpose.msra.mxu0 0.0
    %601 = vmatprep.subr.mxu0 0.0
    %602 = vmatpush1.xpose.msra.mxu0 0.0
    %603 = vmatprep.subr.mxu0 0.0
    %604 = vmatpush1.xpose.msra.mxu0 0.0
    %605 = vmatprep.subr.mxu0 0.0
    %606 = vmatpush1.xpose.msra.mxu0 0.0
    %607 = vmatprep.subr.mxu0 0.0
    %608 = vmatpush1.xpose.msra.mxu0 0.0
    %609 = vmatprep.subr.mxu0 0.0
    %610 = vmatpush1.xpose.msra.mxu0 0.0
    %611 = vmatprep.subr.mxu0 0.0
    %612 = vmatpush1.xpose.msra.mxu0 0.0
    %613 = vmatprep.subr.mxu0 0.0
    %614 = vmatpush1.xpose.msra.mxu0 0.0
    %615 = vmatprep.subr.mxu0 0.0
    %616 = vmatpush1.xpose.msra.mxu0 0.0
    %617 = vmatprep.subr.mxu0 0.0
    %618 = vmatpush1.xpose.msra.mxu0 0.0
    %619 = vmatprep.subr.mxu0 0.0
    %620 = vmatpush1.xpose.msra.mxu0 0.0
    %621 = vmatprep.subr.mxu0 0.0
    %622 = vmatpush1.xpose.msra.mxu0 0.0
    %623 = vmatprep.subr.mxu0 0.0
    %624 = vmatpush1.xpose.msra.mxu0 0.0
    %625 = vmatprep.subr.mxu0 0.0
    %626 = vmatpush1.xpose.msra.mxu0 0.0
    %627 = vmatprep.mubr.f32.mxu0 0.0
    %628 = vmatmul.mubr.f32.gmra.mrb[0].mxu0 %v559
    %v629 = vpop.f32.mrb[0].mxu0
    %v630 = vadd.f32 %v147, %v629
    %v631 = vpop.f32.mrb[0].mxu0
    %632 = vdwg.mxu0
    %v633 = vsel %vm151, %v552, -inf
    %634 = vmax.xlane.f32.xlu0 %v633
    %v635 = vpop.xlane.xlu0 %634
    %v636 = vsel %vm151, %v630, -inf
    %637 = vmax.xlane.f32.xlu0 %v636
    %v638 = vpop.xlane.xlu0 %637
    %v639 = vsub.f32 %v552, %v635
    %v640 = vsub.f32 %v630, %v638
    %v641 = vmul.f32 %v639, 1.442695
    %v642 = vpow.pop %v641
    %v643 = vmul.f32 %v640, 1.442695
    %v644 = vpow.pop %v643
    %v645 = vsel %vm151, %v642, 0.0
    %646 = vadd.xlane.f32.xlu0 %v645
    %v647 = vpop.xlane.xlu0 %646
    %v648 = vsel %vm151, %v644, 0.0
    %649 = vadd.xlane.f32.xlu0 %v648
    %v650 = vpop.xlane.xlu0 %649
    %v651 = vrcp.pop %v647
    %v652 = vrcp.pop %v650
    %v653 = vmul.f32 %v642, %v651
    %v654 = vmul.f32 %v644, %v652
    %655 = vrot.lane.b32.xlu0 %v134, 56
    %v656 = vpop.permute.xlu0 %655
    %v659 = vsel %vm151, %v653, 0
    %661 = vmatprep.subr.mxu0 0.0
    %662 = vmatpush1.msra.mxu0 %v656
    %663 = vmatprep.subr.mxu0 0.0
    %664 = vmatpush1.msra.mxu0 0.0
    %665 = vmatprep.subr.mxu0 0.0
    %666 = vmatpush1.msra.mxu0 0.0
    %667 = vmatprep.subr.mxu0 0.0
    %668 = vmatpush1.msra.mxu0 0.0
    %669 = vmatprep.subr.mxu0 0.0
    %670 = vmatpush1.msra.mxu0 0.0
    %671 = vmatprep.subr.mxu0 0.0
    %672 = vmatpush1.msra.mxu0 0.0
    %673 = vmatprep.subr.mxu0 0.0
    %674 = vmatpush1.msra.mxu0 0.0
    %675 = vmatprep.subr.mxu0 0.0
    %676 = vmatpush1.msra.mxu0 0.0
    %677 = vmatprep.subr.mxu0 0.0
    %678 = vmatpush1.msra.mxu0 0.0
    %679 = vmatprep.subr.mxu0 0.0
    %680 = vmatpush1.msra.mxu0 0.0
    %681 = vmatprep.subr.mxu0 0.0
    %682 = vmatpush1.msra.mxu0 0.0
    %683 = vmatprep.subr.mxu0 0.0
    %684 = vmatpush1.msra.mxu0 0.0
    %685 = vmatprep.subr.mxu0 0.0
    %686 = vmatpush1.msra.mxu0 0.0
    %687 = vmatprep.subr.mxu0 0.0
    %688 = vmatpush1.msra.mxu0 0.0
    %689 = vmatprep.subr.mxu0 0.0
    %690 = vmatpush1.msra.mxu0 0.0
    %691 = vmatprep.subr.mxu0 0.0
    %692 = vmatpush1.msra.mxu0 0.0
    %693 = vmatprep.subr.mxu0 0.0
    %694 = vmatpush1.msra.mxu0 0.0
    %695 = vmatprep.subr.mxu0 0.0
    %696 = vmatpush1.msra.mxu0 0.0
    %697 = vmatprep.subr.mxu0 0.0
    %698 = vmatpush1.msra.mxu0 0.0
    %699 = vmatprep.subr.mxu0 0.0
    %700 = vmatpush1.msra.mxu0 0.0
    %701 = vmatprep.subr.mxu0 0.0
    %702 = vmatpush1.msra.mxu0 0.0
    %703 = vmatprep.subr.mxu0 0.0
    %704 = vmatpush1.msra.mxu0 0.0
    %705 = vmatprep.subr.mxu0 0.0
    %706 = vmatpush1.msra.mxu0 0.0
    %707 = vmatprep.subr.mxu0 0.0
    %708 = vmatpush1.msra.mxu0 0.0
    %709 = vmatprep.subr.mxu0 0.0
    %710 = vmatpush1.msra.mxu0 0.0
    %711 = vmatprep.subr.mxu0 0.0
    %712 = vmatpush1.msra.mxu0 0.0
    %713 = vmatprep.subr.mxu0 0.0
    %714 = vmatpush1.msra.mxu0 0.0
    %715 = vmatprep.subr.mxu0 0.0
    %716 = vmatpush1.msra.mxu0 0.0
    %717 = vmatprep.subr.mxu0 0.0
    %718 = vmatpush1.msra.mxu0 0.0
    %719 = vmatprep.subr.mxu0 0.0
    %720 = vmatpush1.msra.mxu0 0.0
    %721 = vmatprep.subr.mxu0 0.0
    %722 = vmatpush1.msra.mxu0 0.0
    %723 = vmatprep.subr.mxu0 0.0
    %724 = vmatpush1.msra.mxu0 0.0
    %725 = vmatprep.mubr.f32.mxu0 0.0
    %726 = vmatmul.mubr.f32.gmra.mrb[0].mxu0 %v659
    %v727 = vpop.f32.mrb[0].mxu0
    %v728 = vadd.f32 0.0, %v727
    %v729 = vpop.f32.mrb[0].mxu0
    %730 = vdwg.mxu0
    %731 = vrot.lane.b32.xlu0 %v139, 56
    %v732 = vpop.permute.xlu0 %731
    %v735 = vsel %vm151, %v654, 0
    %737 = vmatprep.subr.mxu0 0.0
    %738 = vmatpush1.msra.mxu0 %v732
    %739 = vmatprep.subr.mxu0 0.0
    %740 = vmatpush1.msra.mxu0 0.0
    %741 = vmatprep.subr.mxu0 0.0
    %742 = vmatpush1.msra.mxu0 0.0
    %743 = vmatprep.subr.mxu0 0.0
    %744 = vmatpush1.msra.mxu0 0.0
    %745 = vmatprep.subr.mxu0 0.0
    %746 = vmatpush1.msra.mxu0 0.0
    %747 = vmatprep.subr.mxu0 0.0
    %748 = vmatpush1.msra.mxu0 0.0
    %749 = vmatprep.subr.mxu0 0.0
    %750 = vmatpush1.msra.mxu0 0.0
    %751 = vmatprep.subr.mxu0 0.0
    %752 = vmatpush1.msra.mxu0 0.0
    %753 = vmatprep.subr.mxu0 0.0
    %754 = vmatpush1.msra.mxu0 0.0
    %755 = vmatprep.subr.mxu0 0.0
    %756 = vmatpush1.msra.mxu0 0.0
    %757 = vmatprep.subr.mxu0 0.0
    %758 = vmatpush1.msra.mxu0 0.0
    %759 = vmatprep.subr.mxu0 0.0
    %760 = vmatpush1.msra.mxu0 0.0
    %761 = vmatprep.subr.mxu0 0.0
    %762 = vmatpush1.msra.mxu0 0.0
    %763 = vmatprep.subr.mxu0 0.0
    %764 = vmatpush1.msra.mxu0 0.0
    %765 = vmatprep.subr.mxu0 0.0
    %766 = vmatpush1.msra.mxu0 0.0
    %767 = vmatprep.subr.mxu0 0.0
    %768 = vmatpush1.msra.mxu0 0.0
    %769 = vmatprep.subr.mxu0 0.0
    %770 = vmatpush1.msra.mxu0 0.0
    %771 = vmatprep.subr.mxu0 0.0
    %772 = vmatpush1.msra.mxu0 0.0
    %773 = vmatprep.subr.mxu0 0.0
    %774 = vmatpush1.msra.mxu0 0.0
    %775 = vmatprep.subr.mxu0 0.0
    %776 = vmatpush1.msra.mxu0 0.0
    %777 = vmatprep.subr.mxu0 0.0
    %778 = vmatpush1.msra.mxu0 0.0
    %779 = vmatprep.subr.mxu0 0.0
    %780 = vmatpush1.msra.mxu0 0.0
    %781 = vmatprep.subr.mxu0 0.0
    %782 = vmatpush1.msra.mxu0 0.0
    %783 = vmatprep.subr.mxu0 0.0
    %784 = vmatpush1.msra.mxu0 0.0
    %785 = vmatprep.subr.mxu0 0.0
    %786 = vmatpush1.msra.mxu0 0.0
    %787 = vmatprep.subr.mxu0 0.0
    %788 = vmatpush1.msra.mxu0 0.0
    %789 = vmatprep.subr.mxu0 0.0
    %790 = vmatpush1.msra.mxu0 0.0
    %791 = vmatprep.subr.mxu0 0.0
    %792 = vmatpush1.msra.mxu0 0.0
    %793 = vmatprep.subr.mxu0 0.0
    %794 = vmatpush1.msra.mxu0 0.0
    %795 = vmatprep.subr.mxu0 0.0
    %796 = vmatpush1.msra.mxu0 0.0
    %797 = vmatprep.subr.mxu0 0.0
    %798 = vmatpush1.msra.mxu0 0.0
    %799 = vmatprep.subr.mxu0 0.0
    %800 = vmatpush1.msra.mxu0 0.0
    %801 = vmatprep.mubr.f32.mxu0 0.0
    %802 = vmatmul.mubr.f32.gmra.mrb[0].mxu0 %v735
    %v803 = vpop.f32.mrb[0].mxu0
    %v804 = vadd.f32 0.0, %v803
    %v805 = vpop.f32.mrb[0].mxu0
    %806 = vdwg.mxu0
    %807 = vrot.lane.b32.xlu0 %v134, 112
    %v808 = vpop.permute.xlu0 %807
    %809 = vrot.lane.b32.xlu0 %v134, 80
    %v810 = vpop.permute.xlu0 %809
    %v811 = vsel %vm151, %v808, 0
    %v813 = vsel %vm151, %v810, 0
    %815 = vmatprep.subr.mxu0 0.0
    %816 = vmatpush1.xpose.msra.mxu0 %v813
    %817 = vmatprep.subr.mxu0 0.0
    %818 = vmatpush1.xpose.msra.mxu0 0.0
    %819 = vmatprep.subr.mxu0 0.0
    %820 = vmatpush1.xpose.msra.mxu0 0.0
    %821 = vmatprep.subr.mxu0 0.0
    %822 = vmatpush1.xpose.msra.mxu0 0.0
    %823 = vmatprep.subr.mxu0 0.0
    %824 = vmatpush1.xpose.msra.mxu0 0.0
    %825 = vmatprep.subr.mxu0 0.0
    %826 = vmatpush1.xpose.msra.mxu0 0.0
    %827 = vmatprep.subr.mxu0 0.0
    %828 = vmatpush1.xpose.msra.mxu0 0.0
    %829 = vmatprep.subr.mxu0 0.0
    %830 = vmatpush1.xpose.msra.mxu0 0.0
    %831 = vmatprep.subr.mxu0 0.0
    %832 = vmatpush1.xpose.msra.mxu0 0.0
    %833 = vmatprep.subr.mxu0 0.0
    %834 = vmatpush1.xpose.msra.mxu0 0.0
    %835 = vmatprep.subr.mxu0 0.0
    %836 = vmatpush1.xpose.msra.mxu0 0.0
    %837 = vmatprep.subr.mxu0 0.0
    %838 = vmatpush1.xpose.msra.mxu0 0.0
    %839 = vmatprep.subr.mxu0 0.0
    %840 = vmatpush1.xpose.msra.mxu0 0.0
    %841 = vmatprep.subr.mxu0 0.0
    %842 = vmatpush1.xpose.msra.mxu0 0.0
    %843 = vmatprep.subr.mxu0 0.0
    %844 = vmatpush1.xpose.msra.mxu0 0.0
    %845 = vmatprep.subr.mxu0 0.0
    %846 = vmatpush1.xpose.msra.mxu0 0.0
    %847 = vmatprep.subr.mxu0 0.0
    %848 = vmatpush1.xpose.msra.mxu0 0.0
    %849 = vmatprep.subr.mxu0 0.0
    %850 = vmatpush1.xpose.msra.mxu0 0.0
    %851 = vmatprep.subr.mxu0 0.0
    %852 = vmatpush1.xpose.msra.mxu0 0.0
    %853 = vmatprep.subr.mxu0 0.0
    %854 = vmatpush1.xpose.msra.mxu0 0.0
    %855 = vmatprep.subr.mxu0 0.0
    %856 = vmatpush1.xpose.msra.mxu0 0.0
    %857 = vmatprep.subr.mxu0 0.0
    %858 = vmatpush1.xpose.msra.mxu0 0.0
    %859 = vmatprep.subr.mxu0 0.0
    %860 = vmatpush1.xpose.msra.mxu0 0.0
    %861 = vmatprep.subr.mxu0 0.0
    %862 = vmatpush1.xpose.msra.mxu0 0.0
    %863 = vmatprep.subr.mxu0 0.0
    %864 = vmatpush1.xpose.msra.mxu0 0.0
    %865 = vmatprep.subr.mxu0 0.0
    %866 = vmatpush1.xpose.msra.mxu0 0.0
    %867 = vmatprep.subr.mxu0 0.0
    %868 = vmatpush1.xpose.msra.mxu0 0.0
    %869 = vmatprep.subr.mxu0 0.0
    %870 = vmatpush1.xpose.msra.mxu0 0.0
    %871 = vmatprep.subr.mxu0 0.0
    %872 = vmatpush1.xpose.msra.mxu0 0.0
    %873 = vmatprep.subr.mxu0 0.0
    %874 = vmatpush1.xpose.msra.mxu0 0.0
    %875 = vmatprep.subr.mxu0 0.0
    %876 = vmatpush1.xpose.msra.mxu0 0.0
    %877 = vmatprep.subr.mxu0 0.0
    %878 = vmatpush1.xpose.msra.mxu0 0.0
    %879 = vmatprep.mubr.f32.mxu0 0.0
    %880 = vmatmul.mubr.f32.gmra.mrb[0].mxu0 %v811
    %v881 = vpop.f32.mrb[0].mxu0
    %v882 = vadd.f32 %v147, %v881
    %v883 = vpop.f32.mrb[0].mxu0
    %884 = vdwg.mxu0
    %885 = vrot.lane.b32.xlu0 %v139, 112
    %v886 = vpop.permute.xlu0 %885
    %887 = vrot.lane.b32.xlu0 %v139, 80
    %v888 = vpop.permute.xlu0 %887
    %v889 = vsel %vm151, %v886, 0
    %v891 = vsel %vm151, %v888, 0
    %893 = vmatprep.subr.mxu0 0.0
    %894 = vmatpush1.xpose.msra.mxu0 %v891
    %895 = vmatprep.subr.mxu0 0.0
    %896 = vmatpush1.xpose.msra.mxu0 0.0
    %897 = vmatprep.subr.mxu0 0.0
    %898 = vmatpush1.xpose.msra.mxu0 0.0
    %899 = vmatprep.subr.mxu0 0.0
    %900 = vmatpush1.xpose.msra.mxu0 0.0
    %901 = vmatprep.subr.mxu0 0.0
    %902 = vmatpush1.xpose.msra.mxu0 0.0
    %903 = vmatprep.subr.mxu0 0.0
    %904 = vmatpush1.xpose.msra.mxu0 0.0
    %905 = vmatprep.subr.mxu0 0.0
    %906 = vmatpush1.xpose.msra.mxu0 0.0
    %907 = vmatprep.subr.mxu0 0.0
    %908 = vmatpush1.xpose.msra.mxu0 0.0
    %909 = vmatprep.subr.mxu0 0.0
    %910 = vmatpush1.xpose.msra.mxu0 0.0
    %911 = vmatprep.subr.mxu0 0.0
    %912 = vmatpush1.xpose.msra.mxu0 0.0
    %913 = vmatprep.subr.mxu0 0.0
    %914 = vmatpush1.xpose.msra.mxu0 0.0
    %915 = vmatprep.subr.mxu0 0.0
    %916 = vmatpush1.xpose.msra.mxu0 0.0
    %917 = vmatprep.subr.mxu0 0.0
    %918 = vmatpush1.xpose.msra.mxu0 0.0
    %919 = vmatprep.subr.mxu0 0.0
    %920 = vmatpush1.xpose.msra.mxu0 0.0
    %921 = vmatprep.subr.mxu0 0.0
    %922 = vmatpush1.xpose.msra.mxu0 0.0
    %923 = vmatprep.subr.mxu0 0.0
    %924 = vmatpush1.xpose.msra.mxu0 0.0
    %925 = vmatprep.subr.mxu0 0.0
    %926 = vmatpush1.xpose.msra.mxu0 0.0
    %927 = vmatprep.subr.mxu0 0.0
    %928 = vmatpush1.xpose.msra.mxu0 0.0
    %929 = vmatprep.subr.mxu0 0.0
    %930 = vmatpush1.xpose.msra.mxu0 0.0
    %931 = vmatprep.subr.mxu0 0.0
    %932 = vmatpush1.xpose.msra.mxu0 0.0
    %933 = vmatprep.subr.mxu0 0.0
    %934 = vmatpush1.xpose.msra.mxu0 0.0
    %935 = vmatprep.subr.mxu0 0.0
    %936 = vmatpush1.xpose.msra.mxu0 0.0
    %937 = vmatprep.subr.mxu0 0.0
    %938 = vmatpush1.xpose.msra.mxu0 0.0
    %939 = vmatprep.subr.mxu0 0.0
    %940 = vmatpush1.xpose.msra.mxu0 0.0
    %941 = vmatprep.subr.mxu0 0.0
    %942 = vmatpush1.xpose.msra.mxu0 0.0
    %943 = vmatprep.subr.mxu0 0.0
    %944 = vmatpush1.xpose.msra.mxu0 0.0
    %945 = vmatprep.subr.mxu0 0.0
    %946 = vmatpush1.xpose.msra.mxu0 0.0
    %947 = vmatprep.subr.mxu0 0.0
    %948 = vmatpush1.xpose.msra.mxu0 0.0
    %949 = vmatprep.subr.mxu0 0.0
    %950 = vmatpush1.xpose.msra.mxu0 0.0
    %951 = vmatprep.subr.mxu0 0.0
    %952 = vmatpush1.xpose.msra.mxu0 0.0
    %953 = vmatprep.subr.mxu0 0.0
    %954 = vmatpush1.xpose.msra.mxu0 0.0
    %955 = vmatprep.subr.mxu0 0.0
    %956 = vmatpush1.xpose.msra.mxu0 0.0
    %957 = vmatprep.mubr.f32.mxu0 0.0
    %958 = vmatmul.mubr.f32.gmra.mrb[0].mxu0 %v889
    %v959 = vpop.f32.mrb[0].mxu0
    %v960 = vadd.f32 %v147, %v959
    %v961 = vpop.f32.mrb[0].mxu0
    %962 = vdwg.mxu0
    %v963 = vsel %vm151, %v882, -inf
    %964 = vmax.xlane.f32.xlu0 %v963
    %v965 = vpop.xlane.xlu0 %964
    %v966 = vsel %vm151, %v960, -inf
    %967 = vmax.xlane.f32.xlu0 %v966
    %v968 = vpop.xlane.xlu0 %967
    %v969 = vsub.f32 %v882, %v965
    %v970 = vsub.f32 %v960, %v968
    %v971 = vmul.f32 %v969, 1.442695
    %v972 = vpow.pop %v971
    %v973 = vmul.f32 %v970, 1.442695
    %v974 = vpow.pop %v973
    %v975 = vsel %vm151, %v972, 0.0
    %976 = vadd.xlane.f32.xlu0 %v975
    %v977 = vpop.xlane.xlu0 %976
    %v978 = vsel %vm151, %v974, 0.0
    %979 = vadd.xlane.f32.xlu0 %v978
    %v980 = vpop.xlane.xlu0 %979
    %v981 = vrcp.pop %v977
    %v982 = vrcp.pop %v980
    %v983 = vmul.f32 %v972, %v981
    %v984 = vmul.f32 %v974, %v982
    %985 = vrot.lane.b32.xlu0 %v134, 48
    %v986 = vpop.permute.xlu0 %985
    %v989 = vsel %vm151, %v983, 0
    %991 = vmatprep.subr.mxu0 0.0
    %992 = vmatpush1.msra.mxu0 %v986
    %993 = vmatprep.subr.mxu0 0.0
    %994 = vmatpush1.msra.mxu0 0.0
    %995 = vmatprep.subr.mxu0 0.0
    %996 = vmatpush1.msra.mxu0 0.0
    %997 = vmatprep.subr.mxu0 0.0
    %998 = vmatpush1.msra.mxu0 0.0
    %999 = vmatprep.subr.mxu0 0.0
    %1000 = vmatpush1.msra.mxu0 0.0
    %1001 = vmatprep.subr.mxu0 0.0
    %1002 = vmatpush1.msra.mxu0 0.0
    %1003 = vmatprep.subr.mxu0 0.0
    %1004 = vmatpush1.msra.mxu0 0.0
    %1005 = vmatprep.subr.mxu0 0.0
    %1006 = vmatpush1.msra.mxu0 0.0
    %1007 = vmatprep.subr.mxu0 0.0
    %1008 = vmatpush1.msra.mxu0 0.0
    %1009 = vmatprep.subr.mxu0 0.0
    %1010 = vmatpush1.msra.mxu0 0.0
    %1011 = vmatprep.subr.mxu0 0.0
    %1012 = vmatpush1.msra.mxu0 0.0
    %1013 = vmatprep.subr.mxu0 0.0
    %1014 = vmatpush1.msra.mxu0 0.0
    %1015 = vmatprep.subr.mxu0 0.0
    %1016 = vmatpush1.msra.mxu0 0.0
    %1017 = vmatprep.subr.mxu0 0.0
    %1018 = vmatpush1.msra.mxu0 0.0
    %1019 = vmatprep.subr.mxu0 0.0
    %1020 = vmatpush1.msra.mxu0 0.0
    %1021 = vmatprep.subr.mxu0 0.0
    %1022 = vmatpush1.msra.mxu0 0.0
    %1023 = vmatprep.subr.mxu0 0.0
    %1024 = vmatpush1.msra.mxu0 0.0
    %1025 = vmatprep.subr.mxu0 0.0
    %1026 = vmatpush1.msra.mxu0 0.0
    %1027 = vmatprep.subr.mxu0 0.0
    %1028 = vmatpush1.msra.mxu0 0.0
    %1029 = vmatprep.subr.mxu0 0.0
    %1030 = vmatpush1.msra.mxu0 0.0
    %1031 = vmatprep.subr.mxu0 0.0
    %1032 = vmatpush1.msra.mxu0 0.0
    %1033 = vmatprep.subr.mxu0 0.0
    %1034 = vmatpush1.msra.mxu0 0.0
    %1035 = vmatprep.subr.mxu0 0.0
    %1036 = vmatpush1.msra.mxu0 0.0
    %1037 = vmatprep.subr.mxu0 0.0
    %1038 = vmatpush1.msra.mxu0 0.0
    %1039 = vmatprep.subr.mxu0 0.0
    %1040 = vmatpush1.msra.mxu0 0.0
    %1041 = vmatprep.subr.mxu0 0.0
    %1042 = vmatpush1.msra.mxu0 0.0
    %1043 = vmatprep.subr.mxu0 0.0
    %1044 = vmatpush1.msra.mxu0 0.0
    %1045 = vmatprep.subr.mxu0 0.0
    %1046 = vmatpush1.msra.mxu0 0.0
    %1047 = vmatprep.subr.mxu0 0.0
    %1048 = vmatpush1.msra.mxu0 0.0
    %1049 = vmatprep.subr.mxu0 0.0
    %1050 = vmatpush1.msra.mxu0 0.0
    %1051 = vmatprep.subr.mxu0 0.0
    %1052 = vmatpush1.msra.mxu0 0.0
    %1053 = vmatprep.subr.mxu0 0.0
    %1054 = vmatpush1.msra.mxu0 0.0
    %1055 = vmatprep.mubr.f32.mxu0 0.0
    %1056 = vmatmul.mubr.f32.gmra.mrb[0].mxu0 %v989
    %v1057 = vpop.f32.mrb[0].mxu0
    %v1058 = vadd.f32 0.0, %v1057
    %v1059 = vpop.f32.mrb[0].mxu0
    %1060 = vdwg.mxu0
    %1061 = vrot.lane.b32.xlu0 %v139, 48
    %v1062 = vpop.permute.xlu0 %1061
    %v1065 = vsel %vm151, %v984, 0
    %1067 = vmatprep.subr.mxu0 0.0
    %1068 = vmatpush1.msra.mxu0 %v1062
    %1069 = vmatprep.subr.mxu0 0.0
    %1070 = vmatpush1.msra.mxu0 0.0
    %1071 = vmatprep.subr.mxu0 0.0
    %1072 = vmatpush1.msra.mxu0 0.0
    %1073 = vmatprep.subr.mxu0 0.0
    %1074 = vmatpush1.msra.mxu0 0.0
    %1075 = vmatprep.subr.mxu0 0.0
    %1076 = vmatpush1.msra.mxu0 0.0
    %1077 = vmatprep.subr.mxu0 0.0
    %1078 = vmatpush1.msra.mxu0 0.0
    %1079 = vmatprep.subr.mxu0 0.0
    %1080 = vmatpush1.msra.mxu0 0.0
    %1081 = vmatprep.subr.mxu0 0.0
    %1082 = vmatpush1.msra.mxu0 0.0
    %1083 = vmatprep.subr.mxu0 0.0
    %1084 = vmatpush1.msra.mxu0 0.0
    %1085 = vmatprep.subr.mxu0 0.0
    %1086 = vmatpush1.msra.mxu0 0.0
    %1087 = vmatprep.subr.mxu0 0.0
    %1088 = vmatpush1.msra.mxu0 0.0
    %1089 = vmatprep.subr.mxu0 0.0
    %1090 = vmatpush1.msra.mxu0 0.0
    %1091 = vmatprep.subr.mxu0 0.0
    %1092 = vmatpush1.msra.mxu0 0.0
    %1093 = vmatprep.subr.mxu0 0.0
    %1094 = vmatpush1.msra.mxu0 0.0
    %1095 = vmatprep.subr.mxu0 0.0
    %1096 = vmatpush1.msra.mxu0 0.0
    %1097 = vmatprep.subr.mxu0 0.0
    %1098 = vmatpush1.msra.mxu0 0.0
    %1099 = vmatprep.subr.mxu0 0.0
    %1100 = vmatpush1.msra.mxu0 0.0
    %1101 = vmatprep.subr.mxu0 0.0
    %1102 = vmatpush1.msra.mxu0 0.0
    %1103 = vmatprep.subr.mxu0 0.0
    %1104 = vmatpush1.msra.mxu0 0.0
    %1105 = vmatprep.subr.mxu0 0.0
    %1106 = vmatpush1.msra.mxu0 0.0
    %1107 = vmatprep.subr.mxu0 0.0
    %1108 = vmatpush1.msra.mxu0 0.0
    %1109 = vmatprep.subr.mxu0 0.0
    %1110 = vmatpush1.msra.mxu0 0.0
    %1111 = vmatprep.subr.mxu0 0.0
    %1112 = vmatpush1.msra.mxu0 0.0
    %1113 = vmatprep.subr.mxu0 0.0
    %1114 = vmatpush1.msra.mxu0 0.0
    %1115 = vmatprep.subr.mxu0 0.0
    %1116 = vmatpush1.msra.mxu0 0.0
    %1117 = vmatprep.subr.mxu0 0.0
    %1118 = vmatpush1.msra.mxu0 0.0
    %1119 = vmatprep.subr.mxu0 0.0
    %1120 = vmatpush1.msra.mxu0 0.0
    %1121 = vmatprep.subr.mxu0 0.0
    %1122 = vmatpush1.msra.mxu0 0.0
    %1123 = vmatprep.subr.mxu0 0.0
    %1124 = vmatpush1.msra.mxu0 0.0
    %1125 = vmatprep.subr.mxu0 0.0
    %1126 = vmatpush1.msra.mxu0 0.0
    %1127 = vmatprep.subr.mxu0 0.0
    %1128 = vmatpush1.msra.mxu0 0.0
    %1129 = vmatprep.subr.mxu0 0.0
    %1130 = vmatpush1.msra.mxu0 0.0
    %1131 = vmatprep.mubr.f32.mxu0 0.0
    %1132 = vmatmul.mubr.f32.gmra.mrb[0].mxu0 %v1065
    %v1133 = vpop.f32.mrb[0].mxu0
    %v1134 = vadd.f32 0.0, %v1133
    %v1135 = vpop.f32.mrb[0].mxu0
    %1136 = vdwg.mxu0
    %1137 = vrot.lane.b32.xlu0 %v134, 104
    %v1138 = vpop.permute.xlu0 %1137
    %1139 = vrot.lane.b32.xlu0 %v134, 72
    %v1140 = vpop.permute.xlu0 %1139
    %v1141 = vsel %vm151, %v1138, 0
    %v1143 = vsel %vm151, %v1140, 0
    %1145 = vmatprep.subr.mxu0 0.0
    %1146 = vmatpush1.xpose.msra.mxu0 %v1143
    %1147 = vmatprep.subr.mxu0 0.0
    %1148 = vmatpush1.xpose.msra.mxu0 0.0
    %1149 = vmatprep.subr.mxu0 0.0
    %1150 = vmatpush1.xpose.msra.mxu0 0.0
    %1151 = vmatprep.subr.mxu0 0.0
    %1152 = vmatpush1.xpose.msra.mxu0 0.0
    %1153 = vmatprep.subr.mxu0 0.0
    %1154 = vmatpush1.xpose.msra.mxu0 0.0
    %1155 = vmatprep.subr.mxu0 0.0
    %1156 = vmatpush1.xpose.msra.mxu0 0.0
    %1157 = vmatprep.subr.mxu0 0.0
    %1158 = vmatpush1.xpose.msra.mxu0 0.0
    %1159 = vmatprep.subr.mxu0 0.0
    %1160 = vmatpush1.xpose.msra.mxu0 0.0
    %1161 = vmatprep.subr.mxu0 0.0
    %1162 = vmatpush1.xpose.msra.mxu0 0.0
    %1163 = vmatprep.subr.mxu0 0.0
    %1164 = vmatpush1.xpose.msra.mxu0 0.0
    %1165 = vmatprep.subr.mxu0 0.0
    %1166 = vmatpush1.xpose.msra.mxu0 0.0
    %1167 = vmatprep.subr.mxu0 0.0
    %1168 = vmatpush1.xpose.msra.mxu0 0.0
    %1169 = vmatprep.subr.mxu0 0.0
    %1170 = vmatpush1.xpose.msra.mxu0 0.0
    %1171 = vmatprep.subr.mxu0 0.0
    %1172 = vmatpush1.xpose.msra.mxu0 0.0
    %1173 = vmatprep.subr.mxu0 0.0
    %1174 = vmatpush1.xpose.msra.mxu0 0.0
    %1175 = vmatprep.subr.mxu0 0.0
    %1176 = vmatpush1.xpose.msra.mxu0 0.0
    %1177 = vmatprep.subr.mxu0 0.0
    %1178 = vmatpush1.xpose.msra.mxu0 0.0
    %1179 = vmatprep.subr.mxu0 0.0
    %1180 = vmatpush1.xpose.msra.mxu0 0.0
    %1181 = vmatprep.subr.mxu0 0.0
    %1182 = vmatpush1.xpose.msra.mxu0 0.0
    %1183 = vmatprep.subr.mxu0 0.0
    %1184 = vmatpush1.xpose.msra.mxu0 0.0
    %1185 = vmatprep.subr.mxu0 0.0
    %1186 = vmatpush1.xpose.msra.mxu0 0.0
    %1187 = vmatprep.subr.mxu0 0.0
    %1188 = vmatpush1.xpose.msra.mxu0 0.0
    %1189 = vmatprep.subr.mxu0 0.0
    %1190 = vmatpush1.xpose.msra.mxu0 0.0
    %1191 = vmatprep.subr.mxu0 0.0
    %1192 = vmatpush1.xpose.msra.mxu0 0.0
    %1193 = vmatprep.subr.mxu0 0.0
    %1194 = vmatpush1.xpose.msra.mxu0 0.0
    %1195 = vmatprep.subr.mxu0 0.0
    %1196 = vmatpush1.xpose.msra.mxu0 0.0
    %1197 = vmatprep.subr.mxu0 0.0
    %1198 = vmatpush1.xpose.msra.mxu0 0.0
    %1199 = vmatprep.subr.mxu0 0.0
    %1200 = vmatpush1.xpose.msra.mxu0 0.0
    %1201 = vmatprep.subr.mxu0 0.0
    %1202 = vmatpush1.xpose.msra.mxu0 0.0
    %1203 = vmatprep.subr.mxu0 0.0
    %1204 = vmatpush1.xpose.msra.mxu0 0.0
    %1205 = vmatprep.subr.mxu0 0.0
    %1206 = vmatpush1.xpose.msra.mxu0 0.0
    %1207 = vmatprep.subr.mxu0 0.0
    %1208 = vmatpush1.xpose.msra.mxu0 0.0
    %1209 = vmatprep.mubr.f32.mxu0 0.0
    %1210 = vmatmul.mubr.f32.gmra.mrb[0].mxu0 %v1141
    %v1211 = vpop.f32.mrb[0].mxu0
    %v1212 = vadd.f32 %v147, %v1211
    %v1213 = vpop.f32.mrb[0].mxu0
    %1214 = vdwg.mxu0
    %1215 = vrot.lane.b32.xlu0 %v139, 104
    %v1216 = vpop.permute.xlu0 %1215
    %1217 = vrot.lane.b32.xlu0 %v139, 72
    %v1218 = vpop.permute.xlu0 %1217
    %v1219 = vsel %vm151, %v1216, 0
    %v1221 = vsel %vm151, %v1218, 0
    %1223 = vmatprep.subr.mxu0 0.0
    %1224 = vmatpush1.xpose.msra.mxu0 %v1221
    %1225 = vmatprep.subr.mxu0 0.0
    %1226 = vmatpush1.xpose.msra.mxu0 0.0
    %1227 = vmatprep.subr.mxu0 0.0
    %1228 = vmatpush1.xpose.msra.mxu0 0.0
    %1229 = vmatprep.subr.mxu0 0.0
    %1230 = vmatpush1.xpose.msra.mxu0 0.0
    %1231 = vmatprep.subr.mxu0 0.0
    %1232 = vmatpush1.xpose.msra.mxu0 0.0
    %1233 = vmatprep.subr.mxu0 0.0
    %1234 = vmatpush1.xpose.msra.mxu0 0.0
    %1235 = vmatprep.subr.mxu0 0.0
    %1236 = vmatpush1.xpose.msra.mxu0 0.0
    %1237 = vmatprep.subr.mxu0 0.0
    %1238 = vmatpush1.xpose.msra.mxu0 0.0
    %1239 = vmatprep.subr.mxu0 0.0
    %1240 = vmatpush1.xpose.msra.mxu0 0.0
    %1241 = vmatprep.subr.mxu0 0.0
    %1242 = vmatpush1.xpose.msra.mxu0 0.0
    %1243 = vmatprep.subr.mxu0 0.0
    %1244 = vmatpush1.xpose.msra.mxu0 0.0
    %1245 = vmatprep.subr.mxu0 0.0
    %1246 = vmatpush1.xpose.msra.mxu0 0.0
    %1247 = vmatprep.subr.mxu0 0.0
    %1248 = vmatpush1.xpose.msra.mxu0 0.0
    %1249 = vmatprep.subr.mxu0 0.0
    %1250 = vmatpush1.xpose.msra.mxu0 0.0
    %1251 = vmatprep.subr.mxu0 0.0
    %1252 = vmatpush1.xpose.msra.mxu0 0.0
    %1253 = vmatprep.subr.mxu0 0.0
    %1254 = vmatpush1.xpose.msra.mxu0 0.0
    %1255 = vmatprep.subr.mxu0 0.0
    %1256 = vmatpush1.xpose.msra.mxu0 0.0
    %1257 = vmatprep.subr.mxu0 0.0
    %1258 = vmatpush1.xpose.msra.mxu0 0.0
    %1259 = vmatprep.subr.mxu0 0.0
    %1260 = vmatpush1.xpose.msra.mxu0 0.0
    %1261 = vmatprep.subr.mxu0 0.0
    %1262 = vmatpush1.xpose.msra.mxu0 0.0
    %1263 = vmatprep.subr.mxu0 0.0
    %1264 = vmatpush1.xpose.msra.mxu0 0.0
    %1265 = vmatprep.subr.mxu0 0.0
    %1266 = vmatpush1.xpose.msra.mxu0 0.0
    %1267 = vmatprep.subr.mxu0 0.0
    %1268 = vmatpush1.xpose.msra.mxu0 0.0
    %1269 = vmatprep.subr.mxu0 0.0
    %1270 = vmatpush1.xpose.msra.mxu0 0.0
    %1271 = vmatprep.subr.mxu0 0.0
    %1272 = vmatpush1.xpose.msra.mxu0 0.0
    %1273 = vmatprep.subr.mxu0 0.0
    %1274 = vmatpush1.xpose.msra.mxu0 0.0
    %1275 = vmatprep.subr.mxu0 0.0
    %1276 = vmatpush1.xpose.msra.mxu0 0.0
    %1277 = vmatprep.subr.mxu0 0.0
    %1278 = vmatpush1.xpose.msra.mxu0 0.0
    %1279 = vmatprep.subr.mxu0 0.0
    %1280 = vmatpush1.xpose.msra.mxu0 0.0
    %1281 = vmatprep.subr.mxu0 0.0
    %1282 = vmatpush1.xpose.msra.mxu0 0.0
    %1283 = vmatprep.subr.mxu0 0.0
    %1284 = vmatpush1.xpose.msra.mxu0 0.0
    %1285 = vmatprep.subr.mxu0 0.0
    %1286 = vmatpush1.xpose.msra.mxu0 0.0
    %1287 = vmatprep.mubr.f32.mxu0 0.0
    %1288 = vmatmul.mubr.f32.gmra.mrb[0].mxu0 %v1219
    %v1289 = vpop.f32.mrb[0].mxu0
    %v1290 = vadd.f32 %v147, %v1289
    %v1291 = vpop.f32.mrb[0].mxu0
    %1292 = vdwg.mxu0
    %v1293 = vsel %vm151, %v1212, -inf
    %1294 = vmax.xlane.f32.xlu0 %v1293
    %v1295 = vpop.xlane.xlu0 %1294
    %v1296 = vsel %vm151, %v1290, -inf
    %1297 = vmax.xlane.f32.xlu0 %v1296
    %v1298 = vpop.xlane.xlu0 %1297
    %v1299 = vsub.f32 %v1212, %v1295
    %v1300 = vsub.f32 %v1290, %v1298
    %v1301 = vmul.f32 %v1299, 1.442695
    %v1302 = vpow.pop %v1301
    %v1303 = vmul.f32 %v1300, 1.442695
    %v1304 = vpow.pop %v1303
    %v1305 = vsel %vm151, %v1302, 0.0
    %1306 = vadd.xlane.f32.xlu0 %v1305
    %v1307 = vpop.xlane.xlu0 %1306
    %v1308 = vsel %vm151, %v1304, 0.0
    %1309 = vadd.xlane.f32.xlu0 %v1308
    %v1310 = vpop.xlane.xlu0 %1309
    %v1311 = vrcp.pop %v1307
    %v1312 = vrcp.pop %v1310
    %v1313 = vmul.f32 %v1302, %v1311
    %v1314 = vmul.f32 %v1304, %v1312
    %1315 = vrot.lane.b32.xlu0 %v134, 40
    %v1316 = vpop.permute.xlu0 %1315
    %v1319 = vsel %vm151, %v1313, 0
    %1321 = vmatprep.subr.mxu0 0.0
    %1322 = vmatpush1.msra.mxu0 %v1316
    %1323 = vmatprep.subr.mxu0 0.0
    %1324 = vmatpush1.msra.mxu0 0.0
    %1325 = vmatprep.subr.mxu0 0.0
    %1326 = vmatpush1.msra.mxu0 0.0
    %1327 = vmatprep.subr.mxu0 0.0
    %1328 = vmatpush1.msra.mxu0 0.0
    %1329 = vmatprep.subr.mxu0 0.0
    %1330 = vmatpush1.msra.mxu0 0.0
    %1331 = vmatprep.subr.mxu0 0.0
    %1332 = vmatpush1.msra.mxu0 0.0
    %1333 = vmatprep.subr.mxu0 0.0
    %1334 = vmatpush1.msra.mxu0 0.0
    %1335 = vmatprep.subr.mxu0 0.0
    %1336 = vmatpush1.msra.mxu0 0.0
    %1337 = vmatprep.subr.mxu0 0.0
    %1338 = vmatpush1.msra.mxu0 0.0
    %1339 = vmatprep.subr.mxu0 0.0
    %1340 = vmatpush1.msra.mxu0 0.0
    %1341 = vmatprep.subr.mxu0 0.0
    %1342 = vmatpush1.msra.mxu0 0.0
    %1343 = vmatprep.subr.mxu0 0.0
    %1344 = vmatpush1.msra.mxu0 0.0
    %1345 = vmatprep.subr.mxu0 0.0
    %1346 = vmatpush1.msra.mxu0 0.0
    %1347 = vmatprep.subr.mxu0 0.0
    %1348 = vmatpush1.msra.mxu0 0.0
    %1349 = vmatprep.subr.mxu0 0.0
    %1350 = vmatpush1.msra.mxu0 0.0
    %1351 = vmatprep.subr.mxu0 0.0
    %1352 = vmatpush1.msra.mxu0 0.0
    %1353 = vmatprep.subr.mxu0 0.0
    %1354 = vmatpush1.msra.mxu0 0.0
    %1355 = vmatprep.subr.mxu0 0.0
    %1356 = vmatpush1.msra.mxu0 0.0
    %1357 = vmatprep.subr.mxu0 0.0
    %1358 = vmatpush1.msra.mxu0 0.0
    %1359 = vmatprep.subr.mxu0 0.0
    %1360 = vmatpush1.msra.mxu0 0.0
    %1361 = vmatprep.subr.mxu0 0.0
    %1362 = vmatpush1.msra.mxu0 0.0
    %1363 = vmatprep.subr.mxu0 0.0
    %1364 = vmatpush1.msra.mxu0 0.0
    %1365 = vmatprep.subr.mxu0 0.0
    %1366 = vmatpush1.msra.mxu0 0.0
    %1367 = vmatprep.subr.mxu0 0.0
    %1368 = vmatpush1.msra.mxu0 0.0
    %1369 = vmatprep.subr.mxu0 0.0
    %1370 = vmatpush1.msra.mxu0 0.0
    %1371 = vmatprep.subr.mxu0 0.0
    %1372 = vmatpush1.msra.mxu0 0.0
    %1373 = vmatprep.subr.mxu0 0.0
    %1374 = vmatpush1.msra.mxu0 0.0
    %1375 = vmatprep.subr.mxu0 0.0
    %1376 = vmatpush1.msra.mxu0 0.0
    %1377 = vmatprep.subr.mxu0 0.0
    %1378 = vmatpush1.msra.mxu0 0.0
    %1379 = vmatprep.subr.mxu0 0.0
    %1380 = vmatpush1.msra.mxu0 0.0
    %1381 = vmatprep.subr.mxu0 0.0
    %1382 = vmatpush1.msra.mxu0 0.0
    %1383 = vmatprep.subr.mxu0 0.0
    %1384 = vmatpush1.msra.mxu0 0.0
    %1385 = vmatprep.mubr.f32.mxu0 0.0
    %1386 = vmatmul.mubr.f32.gmra.mrb[0].mxu0 %v1319
    %v1387 = vpop.f32.mrb[0].mxu0
    %v1388 = vadd.f32 0.0, %v1387
    %v1389 = vpop.f32.mrb[0].mxu0
    %1390 = vdwg.mxu0
    %1391 = vrot.lane.b32.xlu0 %v139, 40
    %v1392 = vpop.permute.xlu0 %1391
    %v1395 = vsel %vm151, %v1314, 0
    %1397 = vmatprep.subr.mxu0 0.0
    %1398 = vmatpush1.msra.mxu0 %v1392
    %1399 = vmatprep.subr.mxu0 0.0
    %1400 = vmatpush1.msra.mxu0 0.0
    %1401 = vmatprep.subr.mxu0 0.0
    %1402 = vmatpush1.msra.mxu0 0.0
    %1403 = vmatprep.subr.mxu0 0.0
    %1404 = vmatpush1.msra.mxu0 0.0
    %1405 = vmatprep.subr.mxu0 0.0
    %1406 = vmatpush1.msra.mxu0 0.0
    %1407 = vmatprep.subr.mxu0 0.0
    %1408 = vmatpush1.msra.mxu0 0.0
    %1409 = vmatprep.subr.mxu0 0.0
    %1410 = vmatpush1.msra.mxu0 0.0
    %1411 = vmatprep.subr.mxu0 0.0
    %1412 = vmatpush1.msra.mxu0 0.0
    %1413 = vmatprep.subr.mxu0 0.0
    %1414 = vmatpush1.msra.mxu0 0.0
    %1415 = vmatprep.subr.mxu0 0.0
    %1416 = vmatpush1.msra.mxu0 0.0
    %1417 = vmatprep.subr.mxu0 0.0
    %1418 = vmatpush1.msra.mxu0 0.0
    %1419 = vmatprep.subr.mxu0 0.0
    %1420 = vmatpush1.msra.mxu0 0.0
    %1421 = vmatprep.subr.mxu0 0.0
    %1422 = vmatpush1.msra.mxu0 0.0
    %1423 = vmatprep.subr.mxu0 0.0
    %1424 = vmatpush1.msra.mxu0 0.0
    %1425 = vmatprep.subr.mxu0 0.0
    %1426 = vmatpush1.msra.mxu0 0.0
    %1427 = vmatprep.subr.mxu0 0.0
    %1428 = vmatpush1.msra.mxu0 0.0
    %1429 = vmatprep.subr.mxu0 0.0
    %1430 = vmatpush1.msra.mxu0 0.0
    %1431 = vmatprep.subr.mxu0 0.0
    %1432 = vmatpush1.msra.mxu0 0.0
    %1433 = vmatprep.subr.mxu0 0.0
    %1434 = vmatpush1.msra.mxu0 0.0
    %1435 = vmatprep.subr.mxu0 0.0
    %1436 = vmatpush1.msra.mxu0 0.0
    %1437 = vmatprep.subr.mxu0 0.0
    %1438 = vmatpush1.msra.mxu0 0.0
    %1439 = vmatprep.subr.mxu0 0.0
    %1440 = vmatpush1.msra.mxu0 0.0
    %1441 = vmatprep.subr.mxu0 0.0
    %1442 = vmatpush1.msra.mxu0 0.0
    %1443 = vmatprep.subr.mxu0 0.0
    %1444 = vmatpush1.msra.mxu0 0.0
    %1445 = vmatprep.subr.mxu0 0.0
    %1446 = vmatpush1.msra.mxu0 0.0
    %1447 = vmatprep.subr.mxu0 0.0
    %1448 = vmatpush1.msra.mxu0 0.0
    %1449 = vmatprep.subr.mxu0 0.0
    %1450 = vmatpush1.msra.mxu0 0.0
    %1451 = vmatprep.subr.mxu0 0.0
    %1452 = vmatpush1.msra.mxu0 0.0
    %1453 = vmatprep.subr.mxu0 0.0
    %1454 = vmatpush1.msra.mxu0 0.0
    %1455 = vmatprep.subr.mxu0 0.0
    %1456 = vmatpush1.msra.mxu0 0.0
    %1457 = vmatprep.subr.mxu0 0.0
    %1458 = vmatpush1.msra.mxu0 0.0
    %1459 = vmatprep.subr.mxu0 0.0
    %1460 = vmatpush1.msra.mxu0 0.0
    %1461 = vmatprep.mubr.f32.mxu0 0.0
    %1462 = vmatmul.mubr.f32.gmra.mrb[0].mxu0 %v1395
    %v1463 = vpop.f32.mrb[0].mxu0
    %v1464 = vadd.f32 0.0, %v1463
    %v1465 = vpop.f32.mrb[0].mxu0
    %1466 = vdwg.mxu0
    %1469 = vrot.lane.b32.xlu0 %v728, 8
    %v1470 = vpop.permute.xlu0 %1469
    %1471 = vrot.lane.b32.xlu0 %v804, 8
    %v1472 = vpop.permute.xlu0 %1471
    %1477 = vrot.lane.b32.xlu0 %v1058, 16
    %v1478 = vpop.permute.xlu0 %1477
    %1479 = vrot.lane.b32.xlu0 %v1134, 16
    %v1480 = vpop.permute.xlu0 %1479
    %1485 = vrot.lane.b32.xlu0 %v1388, 24
    %v1486 = vpop.permute.xlu0 %1485
    %1487 = vrot.lane.b32.xlu0 %v1464, 24
    %v1488 = vpop.permute.xlu0 %1487
    %v1491 = vsel %vm151, %v398, %v1470
    %v1492 = vsel %vm151, %v474, %v1472
    %vm1493 = vcmask 130048
    %v1494 = vsel %vm1493, %v1491, %v1478
    %v1495 = vsel %vm1493, %v1492, %v1480
    %vm1496 = vcmask 195584
    %v1497 = vsel %vm1496, %v1494, %v1486
    %v1498 = vsel %vm1496, %v1495, %v1488
    %v1499 = vlaneseq
    %v1500 = vshrl.u32 %v1499, 7
    %v1501 = vsub.s32 1, %v1500
    %v1502 = vrot.slane %v28, %v1501
    %1507 = vrot.lane.b32.xlu0 %v20, 32
    %v1508 = vpop.permute.xlu0 %1507
    %1509 = vrot.lane.b32.xlu0 %v22, 32
    %v1510 = vpop.permute.xlu0 %1509
    %1511 = vrot.lane.b32.xlu0 %v24, 32
    %v1512 = vpop.permute.xlu0 %1511
    %1513 = vrot.lane.b32.xlu0 %v26, 32
    %v1514 = vpop.permute.xlu0 %1513
    %v1520 = vsel %vm29, %v1497, 0
    %v1523 = vsel %vm29, %v1498, 0
    %1525 = vmatprep.subr.mxu0 0.0
    %1526 = vmatpush1.msra.mxu0 %v1508
    %1527 = vmatprep.subr.mxu0 0.0
    %1528 = vmatpush1.msra.mxu0 %v1510
    %1529 = vmatprep.subr.mxu0 0.0
    %1530 = vmatpush1.msra.mxu0 %v1512
    %1531 = vmatprep.subr.mxu0 0.0
    %1532 = vmatpush1.msra.mxu0 %v1514
    %1533 = vmatprep.subr.mxu0 0.0
    %1534 = vmatpush1.msra.mxu0 0.0
    %1535 = vmatprep.subr.mxu0 0.0
    %1536 = vmatpush1.msra.mxu0 0.0
    %1537 = vmatprep.subr.mxu0 0.0
    %1538 = vmatpush1.msra.mxu0 0.0
    %1539 = vmatprep.subr.mxu0 0.0
    %1540 = vmatpush1.msra.mxu0 0.0
    %1541 = vmatprep.subr.mxu0 0.0
    %1542 = vmatpush1.msra.mxu0 0.0
    %1543 = vmatprep.subr.mxu0 0.0
    %1544 = vmatpush1.msra.mxu0 0.0
    %1545 = vmatprep.subr.mxu0 0.0
    %1546 = vmatpush1.msra.mxu0 0.0
    %1547 = vmatprep.subr.mxu0 0.0
    %1548 = vmatpush1.msra.mxu0 0.0
    %1549 = vmatprep.subr.mxu0 0.0
    %1550 = vmatpush1.msra.mxu0 0.0
    %1551 = vmatprep.subr.mxu0 0.0
    %1552 = vmatpush1.msra.mxu0 0.0
    %1553 = vmatprep.subr.mxu0 0.0
    %1554 = vmatpush1.msra.mxu0 0.0
    %1555 = vmatprep.subr.mxu0 0.0
    %1556 = vmatpush1.msra.mxu0 0.0
    %1557 = vmatprep.subr.mxu0 0.0
    %1558 = vmatpush1.msra.mxu0 0.0
    %1559 = vmatprep.subr.mxu0 0.0
    %1560 = vmatpush1.msra.mxu0 0.0
    %1561 = vmatprep.subr.mxu0 0.0
    %1562 = vmatpush1.msra.mxu0 0.0
    %1563 = vmatprep.subr.mxu0 0.0
    %1564 = vmatpush1.msra.mxu0 0.0
    %1565 = vmatprep.subr.mxu0 0.0
    %1566 = vmatpush1.msra.mxu0 0.0
    %1567 = vmatprep.subr.mxu0 0.0
    %1568 = vmatpush1.msra.mxu0 0.0
    %1569 = vmatprep.subr.mxu0 0.0
    %1570 = vmatpush1.msra.mxu0 0.0
    %1571 = vmatprep.subr.mxu0 0.0
    %1572 = vmatpush1.msra.mxu0 0.0
    %1573 = vmatprep.subr.mxu0 0.0
    %1574 = vmatpush1.msra.mxu0 0.0
    %1575 = vmatprep.subr.mxu0 0.0
    %1576 = vmatpush1.msra.mxu0 0.0
    %1577 = vmatprep.subr.mxu0 0.0
    %1578 = vmatpush1.msra.mxu0 0.0
    %1579 = vmatprep.subr.mxu0 0.0
    %1580 = vmatpush1.msra.mxu0 0.0
    %1581 = vmatprep.subr.mxu0 0.0
    %1582 = vmatpush1.msra.mxu0 0.0
    %1583 = vmatprep.subr.mxu0 0.0
    %1584 = vmatpush1.msra.mxu0 0.0
    %1585 = vmatprep.subr.mxu0 0.0
    %1586 = vmatpush1.msra.mxu0 0.0
    %1587 = vmatprep.subr.mxu0 0.0
    %1588 = vmatpush1.msra.mxu0 0.0
    %1589 = vmatprep.mubr.f32.mxu0 0.0
    %1590 = vmatmul.mubr.f32.gmra.mrb[0].mxu0 %v1520
    %v1591 = vpop.f32.mrb[0].mxu0
    %v1592 = vadd.f32 %v1502, %v1591
    %v1593 = vpop.f32.mrb[0].mxu0
    %1594 = vmatprep.mubr.f32.mxu0 0.0
    %1595 = vmatmul.mubr.f32.gmra.mrb[0].mxu0 %v1523
    %v1596 = vpop.f32.mrb[0].mxu0
    %v1597 = vadd.f32 %v1502, %v1596
    %v1598 = vpop.f32.mrb[0].mxu0
    %1599 = vdwg.mxu0
    %v1600 = vadd.f32 %v18, %v1592
    %v1601 = vadd.f32 %v19, %v1597
    %v1602 = vsel %vm29, %v1600, 0.0
    %1603 = vadd.xlane.f32.xlu0 %v1602
    %v1604 = vpop.xlane.xlu0 %1603
    %v1605 = vsel %vm29, %v1601, 0.0
    %1606 = vadd.xlane.f32.xlu0 %v1605
    %v1607 = vpop.xlane.xlu0 %1606
    %v1608 = vmul.f32 %v1604, %v36
    %v1609 = vmul.f32 %v1607, %v36
    %v1610 = vsub.f32 %v1600, %v1608
    %v1611 = vsub.f32 %v1601, %v1609
    %v1612 = vmul.f32 %v1610, %v1610
    %v1613 = vmul.f32 %v1611, %v1611
    %v1614 = vsel %vm29, %v1612, 0.0
    %1615 = vadd.xlane.f32.xlu0 %v1614
    %v1616 = vpop.xlane.xlu0 %1615
    %v1617 = vsel %vm29, %v1613, 0.0
    %1618 = vadd.xlane.f32.xlu0 %v1617
    %v1619 = vpop.xlane.xlu0 %1618
    %v1620 = vmul.f32 %v1616, %v36
    %v1621 = vmul.f32 %v1619, %v36
    %v1622 = vadd.f32 %v1620, 1e-05
    %v1623 = vadd.f32 %v1621, 1e-05
    %v1624 = vrsqrt.pop %v1622
    %v1625 = vrsqrt.pop %v1623
    %v1626 = vmul.f32 %v1610, %v1624
    %v1627 = vmul.f32 %v1611, %v1625
    %v1628 = vlaneseq
    %v1629 = vshrl.u32 %v1628, 7
    %v1630 = vsub.s32 2, %v1629
    %v1631 = vrot.slane %v28, %v1630
    %v1633 = vsel %vm29, %v1626, 0
    %v1636 = vsel %vm29, %v1627, 0
    %1638 = vmatprep.subr.mxu0 0.0
    %1639 = vmatpush1.msra.mxu0 %v21
    %1640 = vmatprep.subr.mxu0 0.0
    %1641 = vmatpush1.msra.mxu0 %v23
    %1642 = vmatprep.subr.mxu0 0.0
    %1643 = vmatpush1.msra.mxu0 %v25
    %1644 = vmatprep.subr.mxu0 0.0
    %1645 = vmatpush1.msra.mxu0 %v27
    %1646 = vmatprep.subr.mxu0 0.0
    %1647 = vmatpush1.msra.mxu0 0.0
    %1648 = vmatprep.subr.mxu0 0.0
    %1649 = vmatpush1.msra.mxu0 0.0
    %1650 = vmatprep.subr.mxu0 0.0
    %1651 = vmatpush1.msra.mxu0 0.0
    %1652 = vmatprep.subr.mxu0 0.0
    %1653 = vmatpush1.msra.mxu0 0.0
    %1654 = vmatprep.subr.mxu0 0.0
    %1655 = vmatpush1.msra.mxu0 0.0
    %1656 = vmatprep.subr.mxu0 0.0
    %1657 = vmatpush1.msra.mxu0 0.0
    %1658 = vmatprep.subr.mxu0 0.0
    %1659 = vmatpush1.msra.mxu0 0.0
    %1660 = vmatprep.subr.mxu0 0.0
    %1661 = vmatpush1.msra.mxu0 0.0
    %1662 = vmatprep.subr.mxu0 0.0
    %1663 = vmatpush1.msra.mxu0 0.0
    %1664 = vmatprep.subr.mxu0 0.0
    %1665 = vmatpush1.msra.mxu0 0.0
    %1666 = vmatprep.subr.mxu0 0.0
    %1667 = vmatpush1.msra.mxu0 0.0
    %1668 = vmatprep.subr.mxu0 0.0
    %1669 = vmatpush1.msra.mxu0 0.0
    %1670 = vmatprep.subr.mxu0 0.0
    %1671 = vmatpush1.msra.mxu0 0.0
    %1672 = vmatprep.subr.mxu0 0.0
    %1673 = vmatpush1.msra.mxu0 0.0
    %1674 = vmatprep.subr.mxu0 0.0
    %1675 = vmatpush1.msra.mxu0 0.0
    %1676 = vmatprep.subr.mxu0 0.0
    %1677 = vmatpush1.msra.mxu0 0.0
    %1678 = vmatprep.subr.mxu0 0.0
    %1679 = vmatpush1.msra.mxu0 0.0
    %1680 = vmatprep.subr.mxu0 0.0
    %1681 = vmatpush1.msra.mxu0 0.0
    %1682 = vmatprep.subr.mxu0 0.0
    %1683 = vmatpush1.msra.mxu0 0.0
    %1684 = vmatprep.subr.mxu0 0.0
    %1685 = vmatpush1.msra.mxu0 0.0
    %1686 = vmatprep.subr.mxu0 0.0
    %1687 = vmatpush1.msra.mxu0 0.0
    %1688 = vmatprep.subr.mxu0 0.0
    %1689 = vmatpush1.msra.mxu0 0.0
    %1690 = vmatprep.subr.mxu0 0.0
    %1691 = vmatpush1.msra.mxu0 0.0
    %1692 = vmatprep.subr.mxu0 0.0
    %1693 = vmatpush1.msra.mxu0 0.0
    %1694 = vmatprep.subr.mxu0 0.0
    %1695 = vmatpush1.msra.mxu0 0.0
    %1696 = vmatprep.subr.mxu0 0.0
    %1697 = vmatpush1.msra.mxu0 0.0
    %1698 = vmatprep.subr.mxu0 0.0
    %1699 = vmatpush1.msra.mxu0 0.0
    %1700 = vmatprep.subr.mxu0 0.0
    %1701 = vmatpush1.msra.mxu0 0.0
    %1702 = vmatprep.mubr.f32.mxu0 0.0
    %1703 = vmatmul.mubr.f32.gmra.mrb[0].mxu0 %v1633
    %v1704 = vpop.f32.mrb[0].mxu0
    %v1705 = vadd.f32 %v1631, %v1704
    %v1706 = vpop.f32.mrb[0].mxu0
    %1707 = vmatprep.mubr.f32.mxu0 0.0
    %1708 = vmatmul.mubr.f32.gmra.mrb[0].mxu0 %v1636
    %v1709 = vpop.f32.mrb[0].mxu0
    %v1710 = vadd.f32 %v1631, %v1709
    %v1711 = vpop.f32.mrb[0].mxu0
    %1712 = vdwg.mxu0
    %v1713 = vmul.f32 %v1705, 0.5
    %v1714 = vmul.f32 %v1710, 0.5
    %v1715 = vmul.f32 %v1705, 0.044715
    %v1716 = vmul.f32 %v1710, 0.044715
    %v1717 = vmul.f32 %v1715, %v1705
    %v1718 = vmul.f32 %v1716, %v1710
    %v1719 = vmul.f32 %v1717, %v1705
    %v1720 = vmul.f32 %v1718, %v1710
    %v1721 = vadd.f32 %v1705, %v1719
    %v1722 = vadd.f32 %v1710, %v1720
    %v1723 = vmul.f32 %v1721, 0.7978846
    %v1724 = vmul.f32 %v1722, 0.7978846
    %v1725 = vtanh.pop %v1723
    %v1726 = vtanh.pop %v1724
    %v1727 = vadd.f32 %v1725, 1.0
    %v1728 = vadd.f32 %v1726, 1.0
    %v1729 = vmul.f32 %v1713, %v1727
    %v1730 = vmul.f32 %v1714, %v1728
    %v1731 = vld [vmem:[%s2] sm:$0xff]
    %v1732 = vld [vmem:[%s2 + $0x8] sm:$0xff]
    %v1733 = vld [vmem:[%s2 + $0x10] sm:$0xff]
    %v1734 = vld [vmem:[%s2 + $0x18] sm:$0xff]
    %v1735 = vld [vmem:[%s2 + $0x20] sm:$0xff]
    %v1736 = vld [vmem:[%s2 + $0x28] sm:$0xff]
    %v1737 = vld [vmem:[%s2 + $0x30] sm:$0xff]
    %v1738 = vld [vmem:[%s2 + $0x38] sm:$0xff]
    %v1739 = vld [vmem:[%s2 + $0x40] sm:$0xff]
    %v1740 = vld [vmem:[%s2 + $0x48] sm:$0xff]
    %v1741 = vld [vmem:[%s2 + $0x50] sm:$0xff]
    %v1742 = vld [vmem:[%s2 + $0x58] sm:$0xff]
    %v1743 = vld [vmem:[%s2 + $0x60] sm:$0xff]
    %v1744 = vld [vmem:[%s2 + $0x68] sm:$0xff]
    %v1745 = vld [vmem:[%s2 + $0x70] sm:$0xff]
    %v1746 = vld [vmem:[%s2 + $0x78] sm:$0xff]
    %v1747 = vlaneseq
    %v1748 = vshrl.u32 %v1747, 7
    %v1749 = vsub.s32 3, %v1748
    %v1750 = vrot.slane %v28, %v1749
    %1751 = vmatprep.subr.mxu0 0.0
    %1752 = vmatpush1.msra.mxu0 %v1731
    %1753 = vmatprep.subr.mxu0 0.0
    %1754 = vmatpush1.msra.mxu0 %v1732
    %1755 = vmatprep.subr.mxu0 0.0
    %1756 = vmatpush1.msra.mxu0 %v1733
    %1757 = vmatprep.subr.mxu0 0.0
    %1758 = vmatpush1.msra.mxu0 %v1734
    %1759 = vmatprep.subr.mxu0 0.0
    %1760 = vmatpush1.msra.mxu0 %v1735
    %1761 = vmatprep.subr.mxu0 0.0
    %1762 = vmatpush1.msra.mxu0 %v1736
    %1763 = vmatprep.subr.mxu0 0.0
    %1764 = vmatpush1.msra.mxu0 %v1737
    %1765 = vmatprep.subr.mxu0 0.0
    %1766 = vmatpush1.msra.mxu0 %v1738
    %1767 = vmatprep.subr.mxu0 0.0
    %1768 = vmatpush1.msra.mxu0 %v1739
    %1769 = vmatprep.subr.mxu0 0.0
    %1770 = vmatpush1.msra.mxu0 %v1740
    %1771 = vmatprep.subr.mxu0 0.0
    %1772 = vmatpush1.msra.mxu0 %v1741
    %1773 = vmatprep.subr.mxu0 0.0
    %1774 = vmatpush1.msra.mxu0 %v1742
    %1775 = vmatprep.subr.mxu0 0.0
    %1776 = vmatpush1.msra.mxu0 %v1743
    %1777 = vmatprep.subr.mxu0 0.0
    %1778 = vmatpush1.msra.mxu0 %v1744
    %1779 = vmatprep.subr.mxu0 0.0
    %1780 = vmatpush1.msra.mxu0 %v1745
    %1781 = vmatprep.subr.mxu0 0.0
    %1782 = vmatpush1.msra.mxu0 %v1746
    %1783 = vmatprep.subr.mxu0 0.0
    %1784 = vmatpush1.msra.mxu0 0.0
    %1785 = vmatprep.subr.mxu0 0.0
    %1786 = vmatpush1.msra.mxu0 0.0
    %1787 = vmatprep.subr.mxu0 0.0
    %1788 = vmatpush1.msra.mxu0 0.0
    %1789 = vmatprep.subr.mxu0 0.0
    %1790 = vmatpush1.msra.mxu0 0.0
    %1791 = vmatprep.subr.mxu0 0.0
    %1792 = vmatpush1.msra.mxu0 0.0
    %1793 = vmatprep.subr.mxu0 0.0
    %1794 = vmatpush1.msra.mxu0 0.0
    %1795 = vmatprep.subr.mxu0 0.0
    %1796 = vmatpush1.msra.mxu0 0.0
    %1797 = vmatprep.subr.mxu0 0.0
    %1798 = vmatpush1.msra.mxu0 0.0
    %1799 = vmatprep.subr.mxu0 0.0
    %1800 = vmatpush1.msra.mxu0 0.0
    %1801 = vmatprep.subr.mxu0 0.0
    %1802 = vmatpush1.msra.mxu0 0.0
    %1803 = vmatprep.subr.mxu0 0.0
    %1804 = vmatpush1.msra.mxu0 0.0
    %1805 = vmatprep.subr.mxu0 0.0
    %1806 = vmatpush1.msra.mxu0 0.0
    %1807 = vmatprep.subr.mxu0 0.0
    %1808 = vmatpush1.msra.mxu0 0.0
    %1809 = vmatprep.subr.mxu0 0.0
    %1810 = vmatpush1.msra.mxu0 0.0
    %1811 = vmatprep.subr.mxu0 0.0
    %1812 = vmatpush1.msra.mxu0 0.0
    %1813 = vmatprep.subr.mxu0 0.0
    %1814 = vmatpush1.msra.mxu0 0.0
    %1815 = vmatprep.mubr.f32.mxu0 0.0
    %1816 = vmatmul.mubr.f32.gmra.mrb[0].mxu0 %v1729
    %v1817 = vpop.f32.mrb[0].mxu0
    %v1818 = vadd.f32 %v1750, %v1817
    %v1819 = vpop.f32.mrb[0].mxu0
    %1820 = vmatprep.mubr.f32.mxu0 0.0
    %1821 = vmatmul.mubr.f32.gmra.mrb[0].mxu0 %v1730
    %v1822 = vpop.f32.mrb[0].mxu0
    %v1823 = vadd.f32 %v1750, %v1822
    %v1824 = vpop.f32.mrb[0].mxu0
    %1825 = vdwg.mxu0
    %v1826 = vadd.f32 %v1600, %v1818
    %v1827 = vadd.f32 %v1601, %v1823
    %1828 = vst.msk [vmem:[#allocation2] sm:$0xff] %vm29, %v1826
    %1829 = vst.msk [vmem:[#allocation2 + $0x8] sm:$0xff] %vm29, %v1827
    // Predicated region
    $region18: #{tpu_custom_call.1} parent=1 // pred_check
      _
    $region19: #{tpu_custom_call.1} parent=1 // pred_check_branch
      %1831 = sbr.rel (0) target = $region21
    $region20: #{tpu_custom_call.1} parent=1 // pred_region
      %s1833 = ssub.s32 256, 256
      %1834 = vsyncadd [#allocation3], %s1833
      %s1835 = sshll.u32 [#allocation2], 4
      %s1836 = int_to_ptr.vmem [resolvable:$true] %s1835
      %1841 = dma.vmem_to_hbm [thread:$0]  %s1836, 256, %s4, [#allocation3], 128, 128, 8
    $region21: #{tpu_custom_call.1} parent=1 // pred_fallthru
      _
    // Predicated region
    $region22: #{tpu_custom_call.1} parent=1 // pred_check
      _
    $region23: #{tpu_custom_call.1} parent=1 // pred_check_branch
      %1843 = sbr.rel (0) target = $region25
    $region24: #{tpu_custom_call.1} parent=1 // pred_region
      %1844 = dma.done [#allocation3], 256
    $region25: #{tpu_custom_call.1} parent=1 // pred_fallthru
      _
    %1845 = vsyncpa [#allocation3], 1

</llo_original>
